<compile_context>
chip_gen: v7x
topology: tpu7x:2x2x1
jax: 0.10.0
libtpu: 0.0.40
codegen_flags: <defaults>
</compile_context>

<pallas_src>
import math
import functools

import jax
import jax.numpy as jnp
from jax.experimental import pallas as pl
from jax.experimental.pallas import tpu as pltpu


# ----------------------------------------------------------------------------
# In-kernel helpers
# ----------------------------------------------------------------------------
def _erf(x):
    # Abramowitz & Stegun 7.1.26 rational approximation (|err| < 1.5e-7).
    # exp -> EUP, 1/(1+p*|x|) -> pl.reciprocal (EUP), keeping the VALU slots free.
    a1, a2, a3, a4, a5 = 0.254829592, -0.284496736, 1.421413741, -1.453152027, 1.061405429
    p = 0.3275911
    sgn = jnp.where(x >= 0.0, 1.0, -1.0)
    ax = jnp.abs(x)
    t = pl.reciprocal(1.0 + p * ax, approx=False)
    poly = ((((a5 * t + a4) * t + a3) * t + a2) * t + a1) * t
    return sgn * (1.0 - poly * jnp.exp(-ax * ax))


def _gelu_exact(x):
    # matches torch.nn.GELU() (erf-based, not tanh approximation)
    return 0.5 * x * (1.0 + _erf(x * 0.7071067811865476))


def _instance_norm_hw(y, eps=1e-5):
    # y: (HW, C); InstanceNorm2d (affine=False, biased variance) over spatial dims.
    mean = jnp.mean(y, axis=0, keepdims=True)
    var = jnp.mean(jnp.square(y - mean), axis=0, keepdims=True)
    return (y - mean) * jax.lax.rsqrt(var + eps)


def _im2col3x3(x):
    """x: (B, H, W, C) f32 -> bf16 patches (B, H*W, 9*C), tap order (ky, kx, c)."""
    B, H, W, C = x.shape
    xp = jnp.pad(x, ((0, 0), (1, 1), (1, 1), (0, 0)))
    patches = jnp.concatenate(
        [xp[:, ky:ky + H, kx:kx + W, :] for ky in range(3) for kx in range(3)], axis=-1)
    # TODO(synk): for large BEV grids, build the 9 taps inside the kernel from the padded
    # map instead of materializing the 9x-inflated patch tensor in HBM.
    return patches.reshape(B, H * W, 9 * C).astype(jnp.bfloat16)


# ----------------------------------------------------------------------------
# Kernel A: 3x3 conv (im2col bf16 matmul) + residual + InstanceNorm
#           (variant A+ also fuses the sampling-offset 1x1 conv head)
# ----------------------------------------------------------------------------
def _conv_res_norm_kernel(p_ref, w_ref, b_ref, x_ref, o_ref):
    conv = jnp.dot(p_ref[0], w_ref[...], preferred_element_type=jnp.float32) + b_ref[...]
    o_ref[0] = _instance_norm_hw(x_ref[0] + conv)


def _conv_res_norm_off_kernel(p_ref, w_ref, b_ref, x_ref,
                              wo_ref, bo_ref, sc_ref, sh_ref,
                              o_ref, off_ref):
    conv = jnp.dot(p_ref[0], w_ref[...], preferred_element_type=jnp.float32) + b_ref[...]
    xn = _instance_norm_hw(x_ref[0] + conv)                       # (HW, C) f32
    o_ref[0] = xn
    # fused sampling_offset head: sigmoid(1x1 conv) * scale + shift, lane-dense (128-pad)
    logits = jnp.dot(xn.astype(jnp.bfloat16), wo_ref[...],
                     preferred_element_type=jnp.float32) + bo_ref[...]
    off_ref[0] = jax.nn.sigmoid(logits) * sc_ref[...] + sh_ref[...]


def _conv3x3_res_norm(x, w, b):
    """x: (B, H, W, C) f32. Returns norm(x + conv3x3(x)) as (B, H*W, C) f32."""
    B, H, W, C = x.shape
    HW = H * W
    patches = _im2col3x3(x)
    x_center = x.reshape(B, HW, C)
    return pl.pallas_call(
        _conv_res_norm_kernel,
        out_shape=jax.ShapeDtypeStruct((B, HW, C), jnp.float32),
        grid=(B,),
        in_specs=[pl.BlockSpec((1, HW, 9 * C), lambda i: (i, 0, 0)),
                  pl.BlockSpec((9 * C, C), lambda i: (0, 0)),
                  pl.BlockSpec((1, C), lambda i: (0, 0)),
                  pl.BlockSpec((1, HW, C), lambda i: (i, 0, 0))],
        out_specs=pl.BlockSpec((1, HW, C), lambda i: (i, 0, 0)),
        compiler_params=pltpu.CompilerParams(dimension_semantics=("parallel",)),
    )(patches, w, b, x_center)


def _conv3x3_res_norm_offsets(x, w, b, w_off, b_off, scale, shift):
    """Fused in_conv + norm1 + sampling-offset head.

    Returns (norm1_out (B,HW,C) f32, scaled_offsets (B,HW,COP) f32, COP = 128-padded)."""
    B, H, W, C = x.shape
    HW = H * W
    COP = w_off.shape[1]
    patches = _im2col3x3(x)
    x_center = x.reshape(B, HW, C)
    return pl.pallas_call(
        _conv_res_norm_off_kernel,
        out_shape=(jax.ShapeDtypeStruct((B, HW, C), jnp.float32),
                   jax.ShapeDtypeStruct((B, HW, COP), jnp.float32)),
        grid=(B,),
        in_specs=[pl.BlockSpec((1, HW, 9 * C), lambda i: (i, 0, 0)),
                  pl.BlockSpec((9 * C, C), lambda i: (0, 0)),
                  pl.BlockSpec((1, C), lambda i: (0, 0)),
                  pl.BlockSpec((1, HW, C), lambda i: (i, 0, 0)),
                  pl.BlockSpec((C, COP), lambda i: (0, 0)),
                  pl.BlockSpec((1, COP), lambda i: (0, 0)),
                  pl.BlockSpec((1, COP), lambda i: (0, 0)),
                  pl.BlockSpec((1, COP), lambda i: (0, 0))],
        out_specs=(pl.BlockSpec((1, HW, C), lambda i: (i, 0, 0)),
                   pl.BlockSpec((1, HW, COP), lambda i: (i, 0, 0))),
        compiler_params=pltpu.CompilerParams(dimension_semantics=("parallel",)),
    )(patches, w, b, x_center, w_off, b_off, scale, shift)


# ----------------------------------------------------------------------------
# Kernel B: mid_conv MLP (1x1 bf16 conv matmuls + GELU) + residual + InstanceNorm
# ----------------------------------------------------------------------------
def _mid_res_norm_kernel(s_ref, x_ref, w1_ref, b1_ref, w2_ref, b2_ref, w3_ref, b3_ref, o_ref):
    s = s_ref[0]                                                   # (HW, 128*P) bf16
    h1 = _gelu_exact(jnp.dot(s, w1_ref[...], preferred_element_type=jnp.float32) + b1_ref[...])
    h2 = _gelu_exact(jnp.dot(h1.astype(jnp.bfloat16), w2_ref[...],
                             preferred_element_type=jnp.float32) + b2_ref[...])
    h3 = jnp.dot(h2.astype(jnp.bfloat16), w3_ref[...],
                 preferred_element_type=jnp.float32) + b3_ref[...]
    o_ref[0] = _instance_norm_hw(x_ref[0] + h3)


def _mid_res_norm(s, x, w1, b1, w2, b2, w3, b3):
    B, HW, Cin = s.shape
    C = x.shape[-1]
    Chid = w1.shape[1]
    return pl.pallas_call(
        _mid_res_norm_kernel,
        out_shape=jax.ShapeDtypeStruct((B, HW, C), jnp.float32),
        grid=(B,),
        in_specs=[pl.BlockSpec((1, HW, Cin), lambda i: (i, 0, 0)),
                  pl.BlockSpec((1, HW, C), lambda i: (i, 0, 0)),
                  pl.BlockSpec((Cin, Chid), lambda i: (0, 0)),
                  pl.BlockSpec((1, Chid), lambda i: (0, 0)),
                  pl.BlockSpec((Chid, Chid), lambda i: (0, 0)),
                  pl.BlockSpec((1, Chid), lambda i: (0, 0)),
                  pl.BlockSpec((Chid, C), lambda i: (0, 0)),
                  pl.BlockSpec((1, C), lambda i: (0, 0))],
        out_specs=pl.BlockSpec((1, HW, C), lambda i: (i, 0, 0)),
        compiler_params=pltpu.CompilerParams(dimension_semantics=("parallel",)),
    )(s, x, w1, b1, w2, b2, w3, b3)


# ----------------------------------------------------------------------------
# Kernel C: bilinear grid-sample as one-hot MXU matmuls (sum over cameras)
# ----------------------------------------------------------------------------
def _sample_kernel(w_ref, f_ref, o_ref, *, n_cam, n_groups):
    # w_ref: (1, N*G, QP, S) bf16 bilinear one-hot weights (validity folded in)
    # f_ref: (1, N*G, S, Cg) bf16 feature maps (channels-last over flattened HfWf)
    # o_ref: (1, G, QP, Cg) bf16 sampled features summed over cameras
    for g in range(n_groups):
        acc = jnp.zeros(o_ref.shape[2:], jnp.float32)
        for n in range(n_cam):
            ng = n * n_groups + g
            acc = acc + jnp.dot(w_ref[0, ng], f_ref[0, ng],
                                preferred_element_type=jnp.float32)
        o_ref[0, g] = acc.astype(o_ref.dtype)


def _onehot_sample(wmat, fgt, n_cam, n_groups):
    B, NG, QP, S = wmat.shape
    Cg = fgt.shape[-1]
    kernel = functools.partial(_sample_kernel, n_cam=n_cam, n_groups=n_groups)
    return pl.pallas_call(
        kernel,
        out_shape=jax.ShapeDtypeStruct((B, n_groups, QP, Cg), jnp.bfloat16),
        grid=(B,),
        in_specs=[pl.BlockSpec((1, NG, QP, S), lambda i: (i, 0, 0, 0)),
                  pl.BlockSpec((1, NG, S, Cg), lambda i: (i, 0, 0, 0))],
        out_specs=pl.BlockSpec((1, n_groups, QP, Cg), lambda i: (i, 0, 0, 0)),
        compiler_params=pltpu.CompilerParams(dimension_semantics=("parallel",)),
    )(wmat, fgt)


def sampling_4d(ref_pts, feat, lidar2img, img_h, img_w, num_groups):
    """Project 3D reference points into each camera and bilinearly sample features.

    ref_pts   : (B, Q, G, P, 3) world/lidar coordinates
    feat      : (B, N, Cimg, Hf, Wf) single feature level (num_levels == 1, scale_weights=None)
    returns   : (B, Q, G, P, Cimg // G) bf16

    The data-dependent gather is reformulated as a one-hot (QP, S) @ (S, Cg) MXU matmul:
    the tiny projection / one-hot-weight construction stays in XLA (vectorized compares,
    no gather), the heavy per-camera matmuls + camera sum run in a Pallas kernel.
    """
    # TODO(synk): sampling_4d is not defined in the provided source; this follows the
    # reference SparseBEV semantics (project -> validity mask ->
    # grid_sample(zeros, align_corners=False) -> sum over cameras).
    eps = 1e-5
    B, Q, G, P, _ = ref_pts.shape
    N = lidar2img.shape[1]
    Cimg, Hf, Wf = feat.shape[2], feat.shape[3], feat.shape[4]
    Cg = Cimg // G
    S = Hf * Wf

    pts = ref_pts.reshape(B, Q * G * P, 3)
    pts_h = jnp.concatenate([pts, jnp.ones_like(pts[..., :1])], axis=-1)      # (B,K,4)
    cam = jnp.einsum('bnij,bkj->bnki', lidar2img, pts_h)                      # (B,N,K,4)
    depth = cam[..., 2]
    depth_c = jnp.maximum(depth, eps)
    u = cam[..., 0] / depth_c / img_w
    v = cam[..., 1] / depth_c / img_h
    valid = ((depth > eps) & (u > 0.0) & (u < 1.0) & (v > 0.0) & (v < 1.0)).astype(jnp.float32)

    # feature-map pixel coords (grid_sample, align_corners=False, zero padding)
    px = u * Wf - 0.5
    py = v * Hf - 0.5
    x0 = jnp.floor(px)
    y0 = jnp.floor(py)
    wx1 = px - x0
    wx0 = 1.0 - wx1
    wy1 = py - y0
    wy0 = 1.0 - wy1
    x0i = x0.astype(jnp.int32)
    y0i = y0.astype(jnp.int32)
    s_idx = jnp.arange(S, dtype=jnp.int32)

    def corner(ix, iy, wgt):
        inb = ((ix >= 0) & (ix < Wf) & (iy >= 0) & (iy < Hf)).astype(jnp.float32)
        lin = jnp.clip(iy, 0, Hf - 1) * Wf + jnp.clip(ix, 0, Wf - 1)          # (B,N,K)
        return (lin[..., None] == s_idx).astype(jnp.float32) * (wgt * inb)[..., None]

    wmat = (corner(x0i, y0i, wx0 * wy0) + corner(x0i + 1, y0i, wx1 * wy0) +
            corner(x0i, y0i + 1, wx0 * wy1) + corner(x0i + 1, y0i + 1, wx1 * wy1))
    wmat = wmat * valid[..., None]                                            # (B,N,K,S)

    # K = (q, g, p) -> rows (g, q*P + p); flatten (N, G) -> n-major for the kernel
    wmat = (wmat.reshape(B, N, Q, G, P, S).transpose(0, 1, 3, 2, 4, 5)
                 .reshape(B, N * G, Q * P, S).astype(jnp.bfloat16))
    fgt = (feat.reshape(B, N, G, Cg, S).transpose(0, 1, 2, 4, 3)
               .reshape(B, N * G, S, Cg).astype(jnp.bfloat16))

    out = _onehot_sample(wmat, fgt, N, G)                                     # (B,G,QP,Cg)
    out = out.reshape(B, G, Q, P, Cg).transpose(0, 2, 1, 3, 4)                # (B,Q,G,P,Cg)
    return out


# ----------------------------------------------------------------------------
# Module wrapper (deterministic synthetic parameters)
# ----------------------------------------------------------------------------
class SegTransformerDecoderLayerPallas:
    def __init__(self, key, embed_dims, num_points, num_groups, num_levels, pc_range, h, w):
        C, P, G = embed_dims, num_points, num_groups
        self.C, self.P, self.G = C, P, G
        self.pc_range = pc_range
        self.img_h, self.img_w = h, w
        ks = jax.random.split(key, 11)

        def uni(k, shape, scale):
            return jax.random.uniform(k, shape, jnp.float32, -scale, scale)

        # in_conv / out_conv : 3x3 convs in im2col layout ((ky,kx,cin) -> cout), bf16 MXU operands
        s3 = 1.0 / math.sqrt(9 * C)
        self.w_in = uni(ks[0], (9 * C, C), s3).astype(jnp.bfloat16)
        self.b_in = uni(ks[1], (1, C), s3)
        self.w_out = uni(ks[2], (9 * C, C), s3).astype(jnp.bfloat16)
        self.b_out = uni(ks[3], (1, C), s3)

        # mid_conv : Conv2d(128*P,512,1) -> GELU -> Conv2d(512,512,1) -> GELU -> Conv2d(512,C,1)
        cin1, hid = 128 * P, 128 * 4
        self.w1 = uni(ks[4], (cin1, hid), 1.0 / math.sqrt(cin1)).astype(jnp.bfloat16)
        self.b1 = uni(ks[5], (1, hid), 1.0 / math.sqrt(cin1))
        self.w2 = uni(ks[6], (hid, hid), 1.0 / math.sqrt(hid)).astype(jnp.bfloat16)
        self.b2 = uni(ks[7], (1, hid), 1.0 / math.sqrt(hid))
        self.w3 = uni(ks[8], (hid, C), 1.0 / math.sqrt(hid)).astype(jnp.bfloat16)
        self.b3 = uni(ks[9], (1, C), 1.0 / math.sqrt(hid))

        # SegSampling.sampling_offset : Conv2d(C, G*P*3, 1); init: zero weight, structured bias.
        # Output channels padded to a 128-multiple so the fused kernel's offset output is
        # lane-dense (unmasked stores); the wrapper slices back to Co.
        Co = G * P * 3
        COP = ((Co + 127) // 128) * 128
        self.Co, self.COP = Co, COP
        self.w_off = jnp.zeros((C, COP), jnp.bfloat16)
        b_xy = jax.random.uniform(ks[10], (G * P, 2), jnp.float32, -4.0, 4.0)
        b_z = jnp.linspace(-0.25, 1.25, G * P, dtype=jnp.float32).reshape(G * P, 1)
        b_off = jnp.concatenate([b_xy, b_z], axis=1).reshape(1, Co)
        self.b_off = jnp.zeros((1, COP), jnp.float32).at[:, :Co].set(b_off)

        e = 1e-5  # SegSampling.eps
        sc = jnp.tile(jnp.array([[(0.25 + e) * 2.0, (0.25 + e) * 2.0, (4.0 + e) * 2.0]],
                                jnp.float32), (1, G * P))
        sh = jnp.tile(jnp.array([[-(0.25 + e), -(0.25 + e), -(4.0 + e)]],
                                jnp.float32), (1, G * P))
        self.off_scale = jnp.zeros((1, COP), jnp.float32).at[:, :Co].set(sc)
        self.off_shift = jnp.zeros((1, COP), jnp.float32).at[:, :Co].set(sh)

    def __call__(self, mlvl_feats, lidar2img, bev_query, bev_pos):
        # bev_query: (B, C, H, W) NCHW; bev_pos: (B, H, W, 3) normalized in [0,1]
        B, C, H, W = bev_query.shape
        HW = H * W
        G, P = self.G, self.P
        x = jnp.transpose(bev_query, (0, 2, 3, 1))                 # (B,H,W,C) channels-last

        # bev_query = norm1(bev_query + in_conv(bev_query)) ; fused sampling-offset head
        x1, off_pad = _conv3x3_res_norm_offsets(
            x, self.w_in, self.b_in, self.w_off, self.b_off, self.off_scale, self.off_shift)

        # world-space reference points; the tiny (B,HW,G,P,3) broadcast add fuses into the
        # slice/reshape in XLA (no G*P-tiled pos array materialized in HBM)
        pr = jnp.array(self.pc_range, jnp.float32)
        pos_w = bev_pos.reshape(B, HW, 3) * (pr[3:] - pr[:3]) + pr[:3]
        off = off_pad[:, :, :self.Co].reshape(B, HW, G, P, 3)
        refs = pos_w[:, :, None, None, :] + off                    # (B,HW,G,P,3)

        sampled = sampling_4d(refs, mlvl_feats[0], lidar2img, self.img_h, self.img_w, G)
        s_flat = sampled.reshape(B, HW, -1)                        # (B,HW,G*P*Cg) == (B,HW,128*P)

        # bev_query = norm2(bev_query + mid_conv(sampled)); then norm3(... + out_conv(...))
        x2 = _mid_res_norm(s_flat, x1, self.w1, self.b1, self.w2, self.b2, self.w3, self.b3)
        x3 = _conv3x3_res_norm(x2.reshape(B, H, W, C), self.w_out, self.b_out)

        return jnp.transpose(x3.reshape(B, H, W, C), (0, 3, 1, 2))  # back to NCHW


# ----------------------------------------------------------------------------
# Deterministic example inputs
# ----------------------------------------------------------------------------
def _make_lidar2img(B, N, img_w, img_h):
    fx = fy = 0.5 * img_w
    cx, cy = img_w / 2.0, img_h / 2.0
    K = jnp.array([[fx, 0.0, cx, 0.0],
                   [0.0, fy, cy, 0.0],
                   [0.0, 0.0, 1.0, 0.0],
                   [0.0, 0.0, 0.0, 1.0]], jnp.float32)
    mats = []
    for n in range(N):
        th = 2.0 * math.pi * n / N
        c, s = math.cos(th), math.sin(th)
        R = jnp.array([[s, -c, 0.0, 0.0],
                       [0.0, 0.0, -1.0, 0.0],
                       [c, s, 0.0, 0.0],
                       [0.0, 0.0, 0.0, 1.0]], jnp.float32)
        mats.append(K @ R)
    return jnp.broadcast_to(jnp.stack(mats), (B, N, 4, 4))


if __name__ == "__main__":
    B, C, H, W = 2, 32, 16, 16          # batch, embed_dims, BEV grid
    P, G = 2, 1                         # num_points, num_groups
    Ncam, Cimg, Hf, Wf = 2, 128, 16, 16 # cameras, image feature channels / spatial
    img_h = img_w = 64
    pc_range = [-50.0, -50.0, -5.0, 50.0, 50.0, 3.0]

    root = jax.random.PRNGKey(0)
    k_param, k_q, k_f = jax.random.split(root, 3)

    layer = SegTransformerDecoderLayerPallas(
        k_param, embed_dims=C, num_points=P, num_groups=G, num_levels=1,
        pc_range=pc_range, h=img_h, w=img_w)

    bev_query = jax.random.normal(k_q, (B, C, H, W), jnp.float32)
    feats = jax.random.normal(k_f, (B, Ncam, Cimg, Hf, Wf), jnp.float32) * 0.1
    lidar2img = _make_lidar2img(B, Ncam, img_w, img_h)

    ys = (jnp.arange(H, dtype=jnp.float32) + 0.5) / H
    xs = (jnp.arange(W, dtype=jnp.float32) + 0.5) / W
    gx, gy = jnp.meshgrid(xs, ys, indexing="xy")
    bev_pos = jnp.broadcast_to(
        jnp.stack([gx, gy, jnp.full((H, W), 0.5, jnp.float32)], axis=-1), (B, H, W, 3))

    out = layer([feats], lidar2img, bev_query, bev_pos)
    out = jax.block_until_ready(out)
    assert out.shape == (B, C, H, W), out.shape
    assert bool(jnp.all(jnp.isfinite(out)))
    print("KERNEL_OK")
</pallas_src>

<mosaic_0001>
module attributes {stable_mosaic.version = 11 : i64} {
  func.func @_conv_res_norm_off_kernel(%arg0: i32, %arg1: memref<1x256x288xbf16, #tpu.memory_space<vmem>>, %arg2: memref<288x32xbf16, #tpu.memory_space<vmem>>, %arg3: memref<1x32xf32, #tpu.memory_space<vmem>>, %arg4: memref<1x256x32xf32, #tpu.memory_space<vmem>>, %arg5: memref<32x128xbf16, #tpu.memory_space<vmem>>, %arg6: memref<1x128xf32, #tpu.memory_space<vmem>>, %arg7: memref<1x128xf32, #tpu.memory_space<vmem>>, %arg8: memref<1x128xf32, #tpu.memory_space<vmem>>, %arg9: memref<1x256x32xf32, #tpu.memory_space<vmem>>, %arg10: memref<1x256x128xf32, #tpu.memory_space<vmem>>) attributes {dimension_semantics = [#tpu.dimension_semantics<parallel>], iteration_bounds = array<i64: 2>, scalar_prefetch = 0 : i64, scratch_operands = 0 : i64, tpu.core_type = #tpu.core_type<tc>, window_params = [{transform_indices = @transform_0, window_bounds = array<i64: 1, 256, 288>}, {pipeline_mode = #tpu.pipeline_mode<synchronous>, transform_indices = @transform_1, window_bounds = array<i64: 288, 32>}, {pipeline_mode = #tpu.pipeline_mode<synchronous>, transform_indices = @transform_2, window_bounds = array<i64: 1, 32>}, {transform_indices = @transform_3, window_bounds = array<i64: 1, 256, 32>}, {pipeline_mode = #tpu.pipeline_mode<synchronous>, transform_indices = @transform_4, window_bounds = array<i64: 32, 128>}, {pipeline_mode = #tpu.pipeline_mode<synchronous>, transform_indices = @transform_5, window_bounds = array<i64: 1, 128>}, {pipeline_mode = #tpu.pipeline_mode<synchronous>, transform_indices = @transform_6, window_bounds = array<i64: 1, 128>}, {pipeline_mode = #tpu.pipeline_mode<synchronous>, transform_indices = @transform_7, window_bounds = array<i64: 1, 128>}, {transform_indices = @transform_8, window_bounds = array<i64: 1, 256, 32>}, {transform_indices = @transform_9, window_bounds = array<i64: 1, 256, 128>}]} {
    %c0 = arith.constant 0 : index
    %c0_0 = arith.constant 0 : index
    %c0_1 = arith.constant 0 : index
    %0 = vector.load %arg1[%c0, %c0_0, %c0_1] : memref<1x256x288xbf16, #tpu.memory_space<vmem>>, vector<1x256x288xbf16>
    %1 = vector.shape_cast %0 : vector<1x256x288xbf16> to vector<256x288xbf16>
    %c0_2 = arith.constant 0 : index
    %c0_3 = arith.constant 0 : index
    %2 = vector.load %arg2[%c0_2, %c0_3] : memref<288x32xbf16, #tpu.memory_space<vmem>>, vector<288x32xbf16>
    %cst = arith.constant dense<0.000000e+00> : vector<256x32xf32>
    %3 = tpu.matmul %1, %2, %cst {dimension_numbers = #tpu.dot_dimension_numbers<[1], [0], [0], [1], [0, 0, 1, 1], [], []>} : vector<256x288xbf16>, vector<288x32xbf16>, vector<256x32xf32> -> vector<256x32xf32>
    %c0_4 = arith.constant 0 : index
    %c0_5 = arith.constant 0 : index
    %4 = vector.load %arg3[%c0_4, %c0_5] : memref<1x32xf32, #tpu.memory_space<vmem>>, vector<1x32xf32>
    %5 = vector.broadcast %4 : vector<1x32xf32> to vector<256x32xf32>
    %6 = arith.addf %3, %5 : vector<256x32xf32>
    %c0_6 = arith.constant 0 : index
    %c0_7 = arith.constant 0 : index
    %c0_8 = arith.constant 0 : index
    %7 = vector.load %arg4[%c0_6, %c0_7, %c0_8] : memref<1x256x32xf32, #tpu.memory_space<vmem>>, vector<1x256x32xf32>
    %8 = vector.shape_cast %7 : vector<1x256x32xf32> to vector<256x32xf32>
    %9 = arith.addf %8, %6 : vector<256x32xf32>
    %cst_9 = arith.constant dense<0.000000e+00> : vector<32xf32>
    %10 = vector.multi_reduction <add>, %9, %cst_9 [0] : vector<256x32xf32> to vector<32xf32>
    %11 = vector.shape_cast %10 : vector<32xf32> to vector<1x32xf32>
    %cst_10 = arith.constant 2.560000e+02 : f32
    %12 = vector.broadcast %cst_10 : f32 to vector<1x32xf32>
    %13 = arith.divf %11, %12 : vector<1x32xf32>
    %14 = vector.broadcast %13 : vector<1x32xf32> to vector<256x32xf32>
    %15 = arith.subf %9, %14 : vector<256x32xf32>
    %16 = arith.mulf %15, %15 : vector<256x32xf32>
    %cst_11 = arith.constant dense<0.000000e+00> : vector<32xf32>
    %17 = vector.multi_reduction <add>, %16, %cst_11 [0] : vector<256x32xf32> to vector<32xf32>
    %18 = vector.shape_cast %17 : vector<32xf32> to vector<1x32xf32>
    %cst_12 = arith.constant 2.560000e+02 : f32
    %19 = vector.broadcast %cst_12 : f32 to vector<1x32xf32>
    %20 = arith.divf %18, %19 : vector<1x32xf32>
    %21 = vector.broadcast %13 : vector<1x32xf32> to vector<256x32xf32>
    %22 = arith.subf %9, %21 : vector<256x32xf32>
    %cst_13 = arith.constant 9.99999974E-6 : f32
    %23 = vector.broadcast %cst_13 : f32 to vector<1x32xf32>
    %24 = arith.addf %20, %23 : vector<1x32xf32>
    %25 = math.rsqrt %24 : vector<1x32xf32>
    %26 = vector.broadcast %25 : vector<1x32xf32> to vector<256x32xf32>
    %27 = arith.mulf %22, %26 : vector<256x32xf32>
    %c0_14 = arith.constant 0 : index
    %c0_15 = arith.constant 0 : index
    %c0_16 = arith.constant 0 : index
    %28 = vector.load %arg9[%c0_14, %c0_15, %c0_16] : memref<1x256x32xf32, #tpu.memory_space<vmem>>, vector<1x256x32xf32>
    %29 = vector.shape_cast %28 : vector<1x256x32xf32> to vector<256x32xf32>
    %30 = vector.shape_cast %27 : vector<256x32xf32> to vector<1x256x32xf32>
    tpu.vector_store %arg9[%c0_14, %c0_15, %c0_16], %30 {strides = array<i32>} : memref<1x256x32xf32, #tpu.memory_space<vmem>>, vector<1x256x32xf32>,
    %31 = arith.truncf %27 : vector<256x32xf32> to vector<256x32xbf16>
    %c0_17 = arith.constant 0 : index
    %c0_18 = arith.constant 0 : index
    %32 = vector.load %arg5[%c0_17, %c0_18] : memref<32x128xbf16, #tpu.memory_space<vmem>>, vector<32x128xbf16>
    %cst_19 = arith.constant dense<0.000000e+00> : vector<256x128xf32>
    %33 = tpu.matmul %31, %32, %cst_19 {dimension_numbers = #tpu.dot_dimension_numbers<[1], [0], [0], [1], [0, 0, 1, 1], [], []>} : vector<256x32xbf16>, vector<32x128xbf16>, vector<256x128xf32> -> vector<256x128xf32>
    %c0_20 = arith.constant 0 : index
    %c0_21 = arith.constant 0 : index
    %34 = vector.load %arg6[%c0_20, %c0_21] : memref<1x128xf32, #tpu.memory_space<vmem>>, vector<1x128xf32>
    %35 = vector.broadcast %34 : vector<1x128xf32> to vector<256x128xf32>
    %36 = arith.addf %33, %35 : vector<256x128xf32>
    %37 = arith.negf %36 : vector<256x128xf32>
    %38 = math.exp %37 : vector<256x128xf32>
    %cst_22 = arith.constant 1.000000e+00 : f32
    %39 = vector.broadcast %cst_22 : f32 to vector<256x128xf32>
    %40 = arith.addf %39, %38 : vector<256x128xf32>
    %41 = arith.divf %39, %40 : vector<256x128xf32>
    %c0_23 = arith.constant 0 : index
    %c0_24 = arith.constant 0 : index
    %42 = vector.load %arg7[%c0_23, %c0_24] : memref<1x128xf32, #tpu.memory_space<vmem>>, vector<1x128xf32>
    %43 = vector.broadcast %42 : vector<1x128xf32> to vector<256x128xf32>
    %44 = arith.mulf %41, %43 : vector<256x128xf32>
    %c0_25 = arith.constant 0 : index
    %c0_26 = arith.constant 0 : index
    %45 = vector.load %arg8[%c0_25, %c0_26] : memref<1x128xf32, #tpu.memory_space<vmem>>, vector<1x128xf32>
    %46 = vector.broadcast %45 : vector<1x128xf32> to vector<256x128xf32>
    %47 = arith.addf %44, %46 : vector<256x128xf32>
    %c0_27 = arith.constant 0 : index
    %c0_28 = arith.constant 0 : index
    %c0_29 = arith.constant 0 : index
    %48 = vector.load %arg10[%c0_27, %c0_28, %c0_29] : memref<1x256x128xf32, #tpu.memory_space<vmem>>, vector<1x256x128xf32>
    %49 = vector.shape_cast %48 : vector<1x256x128xf32> to vector<256x128xf32>
    %50 = vector.shape_cast %47 : vector<256x128xf32> to vector<1x256x128xf32>
    tpu.vector_store %arg10[%c0_27, %c0_28, %c0_29], %50 {strides = array<i32>} : memref<1x256x128xf32, #tpu.memory_space<vmem>>, vector<1x256x128xf32>,
    return
  }
  func.func @transform_0(%arg0: i32) -> (i32, i32, i32) {
    %c0_i32 = arith.constant 0 : i32
    %c0_i32_0 = arith.constant 0 : i32
    %c0_i32_1 = arith.constant 0 : i32
    return %arg0, %c0_i32, %c0_i32_0 : i32, i32, i32
  }
  func.func @transform_1(%arg0: i32) -> (i32, i32) {
    %c0_i32 = arith.constant 0 : i32
    %c0_i32_0 = arith.constant 0 : i32
    %c0_i32_1 = arith.constant 0 : i32
    return %c0_i32, %c0_i32_0 : i32, i32
  }
  func.func @transform_2(%arg0: i32) -> (i32, i32) {
    %c0_i32 = arith.constant 0 : i32
    %c0_i32_0 = arith.constant 0 : i32
    %c0_i32_1 = arith.constant 0 : i32
    return %c0_i32, %c0_i32_0 : i32, i32
  }
  func.func @transform_3(%arg0: i32) -> (i32, i32, i32) {
    %c0_i32 = arith.constant 0 : i32
    %c0_i32_0 = arith.constant 0 : i32
    %c0_i32_1 = arith.constant 0 : i32
    return %arg0, %c0_i32, %c0_i32_0 : i32, i32, i32
  }
  func.func @transform_4(%arg0: i32) -> (i32, i32) {
    %c0_i32 = arith.constant 0 : i32
    %c0_i32_0 = arith.constant 0 : i32
    %c0_i32_1 = arith.constant 0 : i32
    return %c0_i32, %c0_i32_0 : i32, i32
  }
  func.func @transform_5(%arg0: i32) -> (i32, i32) {
    %c0_i32 = arith.constant 0 : i32
    %c0_i32_0 = arith.constant 0 : i32
    %c0_i32_1 = arith.constant 0 : i32
    return %c0_i32, %c0_i32_0 : i32, i32
  }
  func.func @transform_6(%arg0: i32) -> (i32, i32) {
    %c0_i32 = arith.constant 0 : i32
    %c0_i32_0 = arith.constant 0 : i32
    %c0_i32_1 = arith.constant 0 : i32
    return %c0_i32, %c0_i32_0 : i32, i32
  }
  func.func @transform_7(%arg0: i32) -> (i32, i32) {
    %c0_i32 = arith.constant 0 : i32
    %c0_i32_0 = arith.constant 0 : i32
    %c0_i32_1 = arith.constant 0 : i32
    return %c0_i32, %c0_i32_0 : i32, i32
  }
  func.func @transform_8(%arg0: i32) -> (i32, i32, i32) {
    %c0_i32 = arith.constant 0 : i32
    %c0_i32_0 = arith.constant 0 : i32
    %c0_i32_1 = arith.constant 0 : i32
    return %arg0, %c0_i32, %c0_i32_0 : i32, i32, i32
  }
  func.func @transform_9(%arg0: i32) -> (i32, i32, i32) {
    %c0_i32 = arith.constant 0 : i32
    %c0_i32_0 = arith.constant 0 : i32
    %c0_i32_1 = arith.constant 0 : i32
    return %arg0, %c0_i32, %c0_i32_0 : i32, i32, i32
  }
}

</mosaic_0001>

<llo_original>
// kernel: tpu_custom_call.1
$region0: #{tpu_custom_call.1}
  #allocation0 [shape = 'u32[]', space=smem, size = 0x4, offset = 0x4, fixed_abs, tag = 'smem constant byte address 0x4 - core index']
  #allocation1 [shape = 'u32[144,128]{1,0:T(1,128)}', space=vmem, size = 0x12000, scoped, tag = 'internal scratch']
  %s0 = inlined_call_operand.vmem [shape: bf16[2,256,288], index: 0, kind: input, shape index: {}]
  %s1 = inlined_call_operand.vmem [shape: bf16[288,32], index: 1, kind: input, shape index: {}]
  %s2 = inlined_call_operand.vmem [shape: f32[1,32], index: 2, kind: input, shape index: {}]
  %s3 = inlined_call_operand.vmem [shape: f32[2,256,32], index: 3, kind: input, shape index: {}]
  %s4 = inlined_call_operand.vmem [shape: bf16[32,128], index: 4, kind: input, shape index: {}]
  %s5 = inlined_call_operand.vmem [shape: f32[1,128], index: 5, kind: input, shape index: {}]
  %s6 = inlined_call_operand.vmem [shape: f32[1,128], index: 6, kind: input, shape index: {}]
  %s7 = inlined_call_operand.vmem [shape: f32[1,128], index: 7, kind: input, shape index: {}]
  %s8 = inlined_call_operand.vmem [shape: f32[2,256,32], index: 8, kind: output, shape index: {0}]
  %s9 = inlined_call_operand.hbm [shape: f32[2,256,128], index: 9, kind: output, shape index: {1}]
  %10 = xla_tuple %s8, %s9
  %s11 = sld [smem:[#allocation0]]
  $region73: #{tpu_custom_call.1} parent=0
    _
  %s13 = ssub.s32 1, %s11
  %s14 = scalar_select 0, %s13, %s11
  $region1: #{tpu_custom_call.1} parent=0
    #allocation2 [shape = 'u8[262144]{0}', space=vmem, size = 0x40000, scoped, tag = 'output window, operand 1']
    #allocation3 [shape = 's32[2]{0}', space=sflag, size = 0x8, scoped, tag = 'scoped memory for tpu_custom_call.1']
    %15 = vsyncpa [#allocation3], 0
    %s16 = scalar_lea.sflag [#allocation3], 1
    %17 = vsyncpa %s16, 0
    loop: start=0, step=1, limit=4
    $region2: #{tpu_custom_call.1} parent=1 // loop_pre_header
      _
    $region3: #{tpu_custom_call.1} parent=1 // loop_header
      %s19 = sphi 0, %s23
      %p20 = scmp.ge.s32.totalorder %s19, 4
      %s29 = sphi 0, %s31
      %s32 = sphi 0, %s29
      %s33 = sphi 0, %s32
      %s49 = sphi 0, %s33
      %s53 = sphi 0, %s53
      %s55 = sphi 0, %s53
      %s56 = sphi 0, %s55
      %s70 = sphi 0, %s56
      %s74 = sphi 0, %s74
      %s76 = sphi 0, %s74
      %s77 = sphi 0, %s76
      %s91 = sphi 0, %s77
      %s97 = sphi 0, %s99
      %s100 = sphi 0, %s97
      %s101 = sphi 0, %s100
      %s117 = sphi 0, %s101
      %s121 = sphi 0, %s121
      %s123 = sphi 0, %s121
      %s124 = sphi 0, %s123
      %s138 = sphi 0, %s124
      %s142 = sphi 0, %s142
      %s144 = sphi 0, %s142
      %s145 = sphi 0, %s144
      %s159 = sphi 0, %s145
      %s163 = sphi 0, %s163
      %s165 = sphi 0, %s163
      %s166 = sphi 0, %s165
      %s180 = sphi 0, %s166
      %s184 = sphi 0, %s184
      %s186 = sphi 0, %s184
      %s187 = sphi 0, %s186
      %s201 = sphi 0, %s187
      %s207 = sphi 0, %s209
      %s210 = sphi 0, %s207
      %s211 = sphi 0, %s210
      %s227 = sphi 0, %s211
      %s233 = sphi 0, %s235
      %s236 = sphi 0, %s233
      %s237 = sphi 0, %s236
      %s253 = sphi 0, %s237
    $region4: #{tpu_custom_call.1} parent=1 // loop_header_branch
      %22 = sbr.rel (%p20) target = $region8
    $region5: #{tpu_custom_call.1} parent=1 // loop_body
      %s24 = ssub.s32 %s19, 1
      %s25 = ssub.s32 %s19, 2
      %s26 = sadd.s32 %s19, 1
      %s27 = ssub.s32 %s19, %s26
      %p28 = scmp.eq.s32.totalorder %s27, 0
      %s30 = sadd.s32 %s29, 1
      %s31 = scalar_select %p28, %s29, %s30
      %p34 = pneg %p28
      %p35 = scmp.eq.s32.totalorder %s19, 1
      %p36 = por %p34, %p35
      %p37 = scmp.ne.s32.totalorder %s29, %s32
      %p38 = scmp.eq.s32.totalorder %s19, 0
      %p39 = por %p37, %p38
      %p40 = scmp.ne.s32.totalorder %s29, %s32
      %p41 = scmp.eq.s32.totalorder %s24, 1
      %p42 = por %p40, %p41
      %p43 = scmp.ne.s32.totalorder %s32, %s33
      %p44 = scmp.eq.s32.totalorder %s24, 0
      %p45 = por %p43, %p44
      %p46 = scmp.ne.s32.totalorder %s32, %s33
      %p47 = scmp.eq.s32.totalorder %s25, 1
      %p48 = por %p46, %p47
      %p50 = scmp.ne.s32.totalorder %s33, %s49
      %p51 = scmp.eq.s32.totalorder %s25, 0
      %p52 = por %p50, %p51
      %s54 = sadd.s32 %s53, 1
      %p57 = scmp.eq.s32.totalorder %s19, 1
      %p58 = scmp.ne.s32.totalorder %s53, %s55
      %p59 = scmp.eq.s32.totalorder %s19, 0
      %p60 = por %p58, %p59
      %p61 = scmp.ne.s32.totalorder %s53, %s55
      %p62 = scmp.eq.s32.totalorder %s24, 1
      %p63 = por %p61, %p62
      %p64 = scmp.ne.s32.totalorder %s55, %s56
      %p65 = scmp.eq.s32.totalorder %s24, 0
      %p66 = por %p64, %p65
      %p67 = scmp.ne.s32.totalorder %s55, %s56
      %p68 = scmp.eq.s32.totalorder %s25, 1
      %p69 = por %p67, %p68
      %p71 = scmp.ne.s32.totalorder %s56, %s70
      %p72 = scmp.eq.s32.totalorder %s25, 0
      %p73 = por %p71, %p72
      %s75 = sadd.s32 %s74, 1
      %p78 = scmp.eq.s32.totalorder %s19, 1
      %p79 = scmp.ne.s32.totalorder %s74, %s76
      %p80 = scmp.eq.s32.totalorder %s19, 0
      %p81 = por %p79, %p80
      %p82 = scmp.ne.s32.totalorder %s74, %s76
      %p83 = scmp.eq.s32.totalorder %s24, 1
      %p84 = por %p82, %p83
      %p85 = scmp.ne.s32.totalorder %s76, %s77
      %p86 = scmp.eq.s32.totalorder %s24, 0
      %p87 = por %p85, %p86
      %p88 = scmp.ne.s32.totalorder %s76, %s77
      %p89 = scmp.eq.s32.totalorder %s25, 1
      %p90 = por %p88, %p89
      %p92 = scmp.ne.s32.totalorder %s77, %s91
      %p93 = scmp.eq.s32.totalorder %s25, 0
      %p94 = por %p92, %p93
      %s95 = ssub.s32 %s19, %s26
      %p96 = scmp.eq.s32.totalorder %s95, 0
      %s98 = sadd.s32 %s97, 1
      %s99 = scalar_select %p96, %s97, %s98
      %p102 = pneg %p96
      %p103 = scmp.eq.s32.totalorder %s19, 1
      %p104 = por %p102, %p103
      %p105 = scmp.ne.s32.totalorder %s97, %s100
      %p106 = scmp.eq.s32.totalorder %s19, 0
      %p107 = por %p105, %p106
      %p108 = scmp.ne.s32.totalorder %s97, %s100
      %p109 = scmp.eq.s32.totalorder %s24, 1
      %p110 = por %p108, %p109
      %p111 = scmp.ne.s32.totalorder %s100, %s101
      %p112 = scmp.eq.s32.totalorder %s24, 0
      %p113 = por %p111, %p112
      %p114 = scmp.ne.s32.totalorder %s100, %s101
      %p115 = scmp.eq.s32.totalorder %s25, 1
      %p116 = por %p114, %p115
      %p118 = scmp.ne.s32.totalorder %s101, %s117
      %p119 = scmp.eq.s32.totalorder %s25, 0
      %p120 = por %p118, %p119
      %s122 = sadd.s32 %s121, 1
      %p125 = scmp.eq.s32.totalorder %s19, 1
      %p126 = scmp.ne.s32.totalorder %s121, %s123
      %p127 = scmp.eq.s32.totalorder %s19, 0
      %p128 = por %p126, %p127
      %p129 = scmp.ne.s32.totalorder %s121, %s123
      %p130 = scmp.eq.s32.totalorder %s24, 1
      %p131 = por %p129, %p130
      %p132 = scmp.ne.s32.totalorder %s123, %s124
      %p133 = scmp.eq.s32.totalorder %s24, 0
      %p134 = por %p132, %p133
      %p135 = scmp.ne.s32.totalorder %s123, %s124
      %p136 = scmp.eq.s32.totalorder %s25, 1
      %p137 = por %p135, %p136
      %p139 = scmp.ne.s32.totalorder %s124, %s138
      %p140 = scmp.eq.s32.totalorder %s25, 0
      %p141 = por %p139, %p140
      %s143 = sadd.s32 %s142, 1
      %p146 = scmp.eq.s32.totalorder %s19, 1
      %p147 = scmp.ne.s32.totalorder %s142, %s144
      %p148 = scmp.eq.s32.totalorder %s19, 0
      %p149 = por %p147, %p148
      %p150 = scmp.ne.s32.totalorder %s142, %s144
      %p151 = scmp.eq.s32.totalorder %s24, 1
      %p152 = por %p150, %p151
      %p153 = scmp.ne.s32.totalorder %s144, %s145
      %p154 = scmp.eq.s32.totalorder %s24, 0
      %p155 = por %p153, %p154
      %p156 = scmp.ne.s32.totalorder %s144, %s145
      %p157 = scmp.eq.s32.totalorder %s25, 1
      %p158 = por %p156, %p157
      %p160 = scmp.ne.s32.totalorder %s145, %s159
      %p161 = scmp.eq.s32.totalorder %s25, 0
      %p162 = por %p160, %p161
      %s164 = sadd.s32 %s163, 1
      %p167 = scmp.eq.s32.totalorder %s19, 1
      %p168 = scmp.ne.s32.totalorder %s163, %s165
      %p169 = scmp.eq.s32.totalorder %s19, 0
      %p170 = por %p168, %p169
      %p171 = scmp.ne.s32.totalorder %s163, %s165
      %p172 = scmp.eq.s32.totalorder %s24, 1
      %p173 = por %p171, %p172
      %p174 = scmp.ne.s32.totalorder %s165, %s166
      %p175 = scmp.eq.s32.totalorder %s24, 0
      %p176 = por %p174, %p175
      %p177 = scmp.ne.s32.totalorder %s165, %s166
      %p178 = scmp.eq.s32.totalorder %s25, 1
      %p179 = por %p177, %p178
      %p181 = scmp.ne.s32.totalorder %s166, %s180
      %p182 = scmp.eq.s32.totalorder %s25, 0
      %p183 = por %p181, %p182
      %s185 = sadd.s32 %s184, 1
      %p188 = scmp.eq.s32.totalorder %s19, 1
      %p189 = scmp.ne.s32.totalorder %s184, %s186
      %p190 = scmp.eq.s32.totalorder %s19, 0
      %p191 = por %p189, %p190
      %p192 = scmp.ne.s32.totalorder %s184, %s186
      %p193 = scmp.eq.s32.totalorder %s24, 1
      %p194 = por %p192, %p193
      %p195 = scmp.ne.s32.totalorder %s186, %s187
      %p196 = scmp.eq.s32.totalorder %s24, 0
      %p197 = por %p195, %p196
      %p198 = scmp.ne.s32.totalorder %s186, %s187
      %p199 = scmp.eq.s32.totalorder %s25, 1
      %p200 = por %p198, %p199
      %p202 = scmp.ne.s32.totalorder %s187, %s201
      %p203 = scmp.eq.s32.totalorder %s25, 0
      %p204 = por %p202, %p203
      %s205 = ssub.s32 %s19, %s26
      %p206 = scmp.eq.s32.totalorder %s205, 0
      %s208 = sadd.s32 %s207, 1
      %s209 = scalar_select %p206, %s207, %s208
      %p212 = pneg %p206
      %p213 = scmp.eq.s32.totalorder %s19, 1
      %p214 = por %p212, %p213
      %p215 = scmp.ne.s32.totalorder %s207, %s210
      %p216 = scmp.eq.s32.totalorder %s19, 0
      %p217 = por %p215, %p216
      %p218 = scmp.ne.s32.totalorder %s207, %s210
      %p219 = scmp.eq.s32.totalorder %s24, 1
      %p220 = por %p218, %p219
      %p221 = scmp.ne.s32.totalorder %s210, %s211
      %p222 = scmp.eq.s32.totalorder %s24, 0
      %p223 = por %p221, %p222
      %p224 = scmp.ne.s32.totalorder %s210, %s211
      %p225 = scmp.eq.s32.totalorder %s25, 1
      %p226 = por %p224, %p225
      %p228 = scmp.ne.s32.totalorder %s211, %s227
      %p229 = scmp.eq.s32.totalorder %s25, 0
      %p230 = por %p228, %p229
      %s231 = ssub.s32 %s19, %s26
      %p232 = scmp.eq.s32.totalorder %s231, 0
      %s234 = sadd.s32 %s233, 1
      %s235 = scalar_select %p232, %s233, %s234
      %p238 = pneg %p232
      %p239 = scmp.eq.s32.totalorder %s19, 1
      %p240 = por %p238, %p239
      %p241 = scmp.ne.s32.totalorder %s233, %s236
      %p242 = scmp.eq.s32.totalorder %s19, 0
      %p243 = por %p241, %p242
      %p244 = scmp.ne.s32.totalorder %s233, %s236
      %p245 = scmp.eq.s32.totalorder %s24, 1
      %p246 = por %p244, %p245
      %p247 = scmp.ne.s32.totalorder %s236, %s237
      %p248 = scmp.eq.s32.totalorder %s24, 0
      %p249 = por %p247, %p248
      %p250 = scmp.ne.s32.totalorder %s236, %s237
      %p251 = scmp.eq.s32.totalorder %s25, 1
      %p252 = por %p250, %p251
      %p254 = scmp.ne.s32.totalorder %s237, %s253
      %p255 = scmp.eq.s32.totalorder %s25, 0
      %p256 = por %p254, %p255
      %p257 = scmp.le.s32.totalorder 1, %s19
      %p258 = scmp.lt.s32.totalorder %s19, 3
      %p259 = pnand %p257, %p258
      %p260 = pneg %p259
      // Predicated region
      $region9: #{tpu_custom_call.1} parent=5 // pred_check
        _
      $region10: #{tpu_custom_call.1} parent=5 // pred_check_branch
        %262 = sbr.rel (%p259) target = $region12
      $region11: #{tpu_custom_call.1} parent=5 // pred_region
        %s263 = ssub.s32 %s19, 1
        // Predicated region
        $region13: #{tpu_custom_call.1} parent=11 // pred_check
          %p264 = pneg %p66
        $region14: #{tpu_custom_call.1} parent=11 // pred_check_branch
          %266 = sbr.rel (%p264) target = $region16
        $region15: #{tpu_custom_call.1} parent=11 // pred_region
          _
        $region16: #{tpu_custom_call.1} parent=11 // pred_fallthru
          _
        // Predicated region
        $region17: #{tpu_custom_call.1} parent=11 // pred_check
          %p267 = pneg %p87
        $region18: #{tpu_custom_call.1} parent=11 // pred_check_branch
          %269 = sbr.rel (%p267) target = $region20
        $region19: #{tpu_custom_call.1} parent=11 // pred_region
          _
        $region20: #{tpu_custom_call.1} parent=11 // pred_fallthru
          _
        // Predicated region
        $region21: #{tpu_custom_call.1} parent=11 // pred_check
          %p270 = pneg %p134
        $region22: #{tpu_custom_call.1} parent=11 // pred_check_branch
          %272 = sbr.rel (%p270) target = $region24
        $region23: #{tpu_custom_call.1} parent=11 // pred_region
          _
        $region24: #{tpu_custom_call.1} parent=11 // pred_fallthru
          _
        // Predicated region
        $region25: #{tpu_custom_call.1} parent=11 // pred_check
          %p273 = pneg %p155
        $region26: #{tpu_custom_call.1} parent=11 // pred_check_branch
          %275 = sbr.rel (%p273) target = $region28
        $region27: #{tpu_custom_call.1} parent=11 // pred_region
          _
        $region28: #{tpu_custom_call.1} parent=11 // pred_fallthru
          _
        // Predicated region
        $region29: #{tpu_custom_call.1} parent=11 // pred_check
          %p276 = pneg %p176
        $region30: #{tpu_custom_call.1} parent=11 // pred_check_branch
          %278 = sbr.rel (%p276) target = $region32
        $region31: #{tpu_custom_call.1} parent=11 // pred_region
          _
        $region32: #{tpu_custom_call.1} parent=11 // pred_fallthru
          _
        // Predicated region
        $region33: #{tpu_custom_call.1} parent=11 // pred_check
          %p279 = pneg %p197
        $region34: #{tpu_custom_call.1} parent=11 // pred_check_branch
          %281 = sbr.rel (%p279) target = $region36
        $region35: #{tpu_custom_call.1} parent=11 // pred_region
          _
        $region36: #{tpu_custom_call.1} parent=11 // pred_fallthru
          _
      $region12: #{tpu_custom_call.1} parent=5 // pred_fallthru
        _
      %p282 = scmp.lt.s32.totalorder %s19, 2
      // Predicated region
      $region37: #{tpu_custom_call.1} parent=5 // pred_check
        %p283 = pneg %p282
      $region38: #{tpu_custom_call.1} parent=5 // pred_check_branch
        %285 = sbr.rel (%p283) target = $region40
      $region39: #{tpu_custom_call.1} parent=5 // pred_region
        // Predicated region
        $region41: #{tpu_custom_call.1} parent=39 // pred_check
          %p286 = pneg %p39
        $region42: #{tpu_custom_call.1} parent=39 // pred_check_branch
          %288 = sbr.rel (%p286) target = $region44
        $region43: #{tpu_custom_call.1} parent=39 // pred_region
          %p289 = scmp.lt.s32.totalorder %s19, 1
          %s290 = scalar_select %p289, %s19, 1
          %s291 = smul.addr %s290, 96
          %s292 = smul.addr %s291, 4
          %s293 = scalar_lea.vmem %s0, %s292
        $region44: #{tpu_custom_call.1} parent=39 // pred_fallthru
          _
        // Predicated region
        $region45: #{tpu_custom_call.1} parent=39 // pred_check
          %p294 = pneg %p107
        $region46: #{tpu_custom_call.1} parent=39 // pred_check_branch
          %296 = sbr.rel (%p294) target = $region48
        $region47: #{tpu_custom_call.1} parent=39 // pred_region
          %p297 = scmp.lt.s32.totalorder %s19, 1
          %s298 = scalar_select %p297, %s19, 1
          %s299 = smul.addr %s298, 32
          %s300 = smul.addr %s299, 8
          %s301 = scalar_lea.vmem %s3, %s300
        $region48: #{tpu_custom_call.1} parent=39 // pred_fallthru
          _
      $region40: #{tpu_custom_call.1} parent=5 // pred_fallthru
        _
      %p302 = scmp.le.s32.totalorder 1, %s19
      %p303 = scmp.lt.s32.totalorder %s19, 3
      %p304 = pnand %p302, %p303
      %p305 = pneg %p304
      // Predicated region
      $region49: #{tpu_custom_call.1} parent=5 // pred_check
        _
      $region50: #{tpu_custom_call.1} parent=5 // pred_check_branch
        %307 = sbr.rel (%p304) target = $region52
      $region51: #{tpu_custom_call.1} parent=5 // pred_region
        %s308 = ssub.s32 %s19, 1
        %p309 = scmp.lt.s32.totalorder %s24, 1
        %s310 = scalar_select %p309, %s24, 1
        %s311 = smul.addr %s310, 96
        %s312 = smul.addr %s311, 4
        %s313 = scalar_lea.vmem %s0, %s312
        %p314 = pneg %p45
        %p315 = pneg %p42
        %p316 = pneg %p66
        %p317 = pneg %p63
        %p318 = pneg %p87
        %p319 = pneg %p84
        %p320 = scmp.lt.s32.totalorder %s24, 1
        %s321 = scalar_select %p320, %s24, 1
        %s322 = smul.addr %s321, 32
        %s323 = smul.addr %s322, 8
        %s324 = scalar_lea.vmem %s3, %s323
        %p325 = pneg %p113
        %p326 = pneg %p110
        %p327 = pneg %p134
        %p328 = pneg %p131
        %p329 = pneg %p155
        %p330 = pneg %p152
        %p331 = pneg %p176
        %p332 = pneg %p173
        %p333 = pneg %p197
        %p334 = pneg %p194
        %p335 = pneg %p223
        %p336 = pneg %p220
        %p337 = scmp.lt.s32.totalorder %s24, 1
        %s338 = scalar_select %p337, %s24, 1
        %s339 = smul.addr %s338, 32
        %s340 = smul.addr %s339, 8
        %s341 = scalar_lea.vmem %s8, %s340
        %p342 = pneg %p249
        %p343 = pneg %p246
        %s344 = sand.u32 %s236, 1
        %s345 = scalar_lea.sflag [#allocation3], %s344
        %s346 = sand.u32 %s236, 1
        %s347 = smul.addr %s346, 256
        %s348 = scalar_lea.vmem [#allocation2], %s347
        %p349 = scmp.lt.s32.totalorder %s24, 1
        %s350 = scalar_select %p349, %s24, 1
        %s351 = smul.addr %s350, 96
        %s352 = smul.addr %s351, 4
        %s353 = scalar_lea.vmem %s0, %s352
        %p354 = scmp.lt.s32.totalorder %s24, 1
        %s355 = scalar_select %p354, %s24, 1
        %s356 = smul.addr %s355, 32
        %s357 = smul.addr %s356, 8
        %s358 = scalar_lea.vmem %s3, %s357
        %p359 = scmp.lt.s32.totalorder %s24, 1
        %s360 = scalar_select %p359, %s24, 1
        %s361 = smul.addr %s360, 32
        %s362 = smul.addr %s361, 8
        %s363 = scalar_lea.vmem %s8, %s362
        %v365 = vld [vmem:[%s353] sm:$0xff]
        %v366 = vld [vmem:[%s353 + $0x8] sm:$0xf]
        %v367 = vld [vmem:[%s353 + $0xc] sm:$0xff]
        %v368 = vld [vmem:[%s353 + $0x14] sm:$0xf]
        %v369 = vld [vmem:[%s353 + $0x18] sm:$0xff]
        %v370 = vld [vmem:[%s353 + $0x20] sm:$0xf]
        %v371 = vld [vmem:[%s353 + $0x24] sm:$0xff]
        %v372 = vld [vmem:[%s353 + $0x2c] sm:$0xf]
        %v373 = vld [vmem:[%s353 + $0x30] sm:$0xff]
        %v374 = vld [vmem:[%s353 + $0x38] sm:$0xf]
        %v375 = vld [vmem:[%s353 + $0x3c] sm:$0xff]
        %v376 = vld [vmem:[%s353 + $0x44] sm:$0xf]
        %v377 = vld [vmem:[%s353 + $0x48] sm:$0xff]
        %v378 = vld [vmem:[%s353 + $0x50] sm:$0xf]
        %v379 = vld [vmem:[%s353 + $0x54] sm:$0xff]
        %v380 = vld [vmem:[%s353 + $0x5c] sm:$0xf]
        %v381 = vld [vmem:[%s353 + $0x60] sm:$0xff]
        %v382 = vld [vmem:[%s353 + $0x68] sm:$0xf]
        %v383 = vld [vmem:[%s353 + $0x6c] sm:$0xff]
        %v384 = vld [vmem:[%s353 + $0x74] sm:$0xf]
        %v385 = vld [vmem:[%s353 + $0x78] sm:$0xff]
        %v386 = vld [vmem:[%s353 + $0x80] sm:$0xf]
        %v387 = vld [vmem:[%s353 + $0x84] sm:$0xff]
        %v388 = vld [vmem:[%s353 + $0x8c] sm:$0xf]
        %v389 = vld [vmem:[%s353 + $0x90] sm:$0xff]
        %v390 = vld [vmem:[%s353 + $0x98] sm:$0xf]
        %v391 = vld [vmem:[%s353 + $0x9c] sm:$0xff]
        %v392 = vld [vmem:[%s353 + $0xa4] sm:$0xf]
        %v393 = vld [vmem:[%s353 + $0xa8] sm:$0xff]
        %v394 = vld [vmem:[%s353 + $0xb0] sm:$0xf]
        %v395 = vld [vmem:[%s353 + $0xb4] sm:$0xff]
        %v396 = vld [vmem:[%s353 + $0xbc] sm:$0xf]
        %v397 = vld [vmem:[%s353 + $0xc0] sm:$0xff]
        %v398 = vld [vmem:[%s353 + $0xc8] sm:$0xf]
        %v399 = vld [vmem:[%s353 + $0xcc] sm:$0xff]
        %v400 = vld [vmem:[%s353 + $0xd4] sm:$0xf]
        %v401 = vld [vmem:[%s353 + $0xd8] sm:$0xff]
        %v402 = vld [vmem:[%s353 + $0xe0] sm:$0xf]
        %v403 = vld [vmem:[%s353 + $0xe4] sm:$0xff]
        %v404 = vld [vmem:[%s353 + $0xec] sm:$0xf]
        %v405 = vld [vmem:[%s353 + $0xf0] sm:$0xff]
        %v406 = vld [vmem:[%s353 + $0xf8] sm:$0xf]
        %v407 = vld [vmem:[%s353 + $0xfc] sm:$0xff]
        %v408 = vld [vmem:[%s353 + $0x104] sm:$0xf]
        %v409 = vld [vmem:[%s353 + $0x108] sm:$0xff]
        %v410 = vld [vmem:[%s353 + $0x110] sm:$0xf]
        %v411 = vld [vmem:[%s353 + $0x114] sm:$0xff]
        %v412 = vld [vmem:[%s353 + $0x11c] sm:$0xf]
        %v413 = vld [vmem:[%s353 + $0x120] sm:$0xff]
        %v414 = vld [vmem:[%s353 + $0x128] sm:$0xf]
        %v415 = vld [vmem:[%s353 + $0x12c] sm:$0xff]
        %v416 = vld [vmem:[%s353 + $0x134] sm:$0xf]
        %v417 = vld [vmem:[%s353 + $0x138] sm:$0xff]
        %v418 = vld [vmem:[%s353 + $0x140] sm:$0xf]
        %v419 = vld [vmem:[%s353 + $0x144] sm:$0xff]
        %v420 = vld [vmem:[%s353 + $0x14c] sm:$0xf]
        %v421 = vld [vmem:[%s353 + $0x150] sm:$0xff]
        %v422 = vld [vmem:[%s353 + $0x158] sm:$0xf]
        %v423 = vld [vmem:[%s353 + $0x15c] sm:$0xff]
        %v424 = vld [vmem:[%s353 + $0x164] sm:$0xf]
        %v425 = vld [vmem:[%s353 + $0x168] sm:$0xff]
        %v426 = vld [vmem:[%s353 + $0x170] sm:$0xf]
        %v427 = vld [vmem:[%s353 + $0x174] sm:$0xff]
        %v428 = vld [vmem:[%s353 + $0x17c] sm:$0xf]
        %v429 = vld [vmem:[%s1] sm:$0xf]
        %v430 = vld [vmem:[%s1 + $0x4] sm:$0xf]
        %v431 = vld [vmem:[%s1 + $0x8] sm:$0xf]
        %v432 = vld [vmem:[%s1 + $0xc] sm:$0xf]
        %v433 = vld [vmem:[%s1 + $0x10] sm:$0xf]
        %v434 = vld [vmem:[%s1 + $0x14] sm:$0xf]
        %v435 = vld [vmem:[%s1 + $0x18] sm:$0xf]
        %v436 = vld [vmem:[%s1 + $0x1c] sm:$0xf]
        %v437 = vld [vmem:[%s1 + $0x20] sm:$0xf]
        %v438 = vld [vmem:[%s1 + $0x24] sm:$0xf]
        %v439 = vld [vmem:[%s1 + $0x28] sm:$0xf]
        %v440 = vld [vmem:[%s1 + $0x2c] sm:$0xf]
        %v441 = vld [vmem:[%s1 + $0x30] sm:$0xf]
        %v442 = vld [vmem:[%s1 + $0x34] sm:$0xf]
        %v443 = vld [vmem:[%s1 + $0x38] sm:$0xf]
        %v444 = vld [vmem:[%s1 + $0x3c] sm:$0xf]
        %v445 = vld [vmem:[%s1 + $0x40] sm:$0xf]
        %v446 = vld [vmem:[%s1 + $0x44] sm:$0xf]
        %v447 = vld [vmem:[%s1 + $0x48] sm:$0xf]
        %v448 = vld [vmem:[%s1 + $0x4c] sm:$0xf]
        %v449 = vld [vmem:[%s1 + $0x50] sm:$0xf]
        %v450 = vld [vmem:[%s1 + $0x54] sm:$0xf]
        %v451 = vld [vmem:[%s1 + $0x58] sm:$0xf]
        %v452 = vld [vmem:[%s1 + $0x5c] sm:$0xf]
        %v453 = vld [vmem:[%s1 + $0x60] sm:$0xf]
        %v454 = vld [vmem:[%s1 + $0x64] sm:$0xf]
        %v455 = vld [vmem:[%s1 + $0x68] sm:$0xf]
        %v456 = vld [vmem:[%s1 + $0x6c] sm:$0xf]
        %v457 = vld [vmem:[%s1 + $0x70] sm:$0xf]
        %v458 = vld [vmem:[%s1 + $0x74] sm:$0xf]
        %v459 = vld [vmem:[%s1 + $0x78] sm:$0xf]
        %v460 = vld [vmem:[%s1 + $0x7c] sm:$0xf]
        %v461 = vld [vmem:[%s1 + $0x80] sm:$0xf]
        %v462 = vld [vmem:[%s1 + $0x84] sm:$0xf]
        %v463 = vld [vmem:[%s1 + $0x88] sm:$0xf]
        %v464 = vld [vmem:[%s1 + $0x8c] sm:$0xf]
        %v465 = vld [vmem:[%s2] sm:$0x1]
        %v467 = vlaneseq
        %v468 = vshrl.u32 %v467, 7
        %v469 = vsub.s32 0, %v468
        %v470 = vrot.slane %v465, %v469
        %v536 = vunpack.c.l.b16 %v365
        %v537 = vunpack.c.h.b16 %v365
        %v538 = vunpack.c.l.b16 %v366
        %v539 = vunpack.c.l.b16 %v367
        %v540 = vunpack.c.h.b16 %v367
        %v541 = vunpack.c.l.b16 %v368
        %v542 = vunpack.c.l.b16 %v369
        %v543 = vunpack.c.h.b16 %v369
        %v544 = vunpack.c.l.b16 %v370
        %v545 = vunpack.c.l.b16 %v371
        %v546 = vunpack.c.h.b16 %v371
        %v547 = vunpack.c.l.b16 %v372
        %v548 = vunpack.c.l.b16 %v373
        %v549 = vunpack.c.h.b16 %v373
        %v550 = vunpack.c.l.b16 %v374
        %v551 = vunpack.c.l.b16 %v375
        %v552 = vunpack.c.h.b16 %v375
        %v553 = vunpack.c.l.b16 %v376
        %v554 = vunpack.c.l.b16 %v377
        %v555 = vunpack.c.h.b16 %v377
        %v556 = vunpack.c.l.b16 %v378
        %v557 = vunpack.c.l.b16 %v379
        %v558 = vunpack.c.h.b16 %v379
        %v559 = vunpack.c.l.b16 %v380
        %v560 = vunpack.c.l.b16 %v381
        %v561 = vunpack.c.h.b16 %v381
        %v562 = vunpack.c.l.b16 %v382
        %v563 = vunpack.c.l.b16 %v383
        %v564 = vunpack.c.h.b16 %v383
        %v565 = vunpack.c.l.b16 %v384
        %v566 = vunpack.c.l.b16 %v385
        %v567 = vunpack.c.h.b16 %v385
        %v568 = vunpack.c.l.b16 %v386
        %v569 = vunpack.c.l.b16 %v387
        %v570 = vunpack.c.h.b16 %v387
        %v571 = vunpack.c.l.b16 %v388
        %v572 = vunpack.c.l.b16 %v389
        %v573 = vunpack.c.h.b16 %v389
        %v574 = vunpack.c.l.b16 %v390
        %v575 = vunpack.c.l.b16 %v391
        %v576 = vunpack.c.h.b16 %v391
        %v577 = vunpack.c.l.b16 %v392
        %v578 = vunpack.c.l.b16 %v393
        %v579 = vunpack.c.h.b16 %v393
        %v580 = vunpack.c.l.b16 %v394
        %v581 = vunpack.c.l.b16 %v395
        %v582 = vunpack.c.h.b16 %v395
        %v583 = vunpack.c.l.b16 %v396
        %v584 = vunpack.c.l.b16 %v397
        %v585 = vunpack.c.h.b16 %v397
        %v586 = vunpack.c.l.b16 %v398
        %v587 = vunpack.c.l.b16 %v399
        %v588 = vunpack.c.h.b16 %v399
        %v589 = vunpack.c.l.b16 %v400
        %v590 = vunpack.c.l.b16 %v401
        %v591 = vunpack.c.h.b16 %v401
        %v592 = vunpack.c.l.b16 %v402
        %v593 = vunpack.c.l.b16 %v403
        %v594 = vunpack.c.h.b16 %v403
        %v595 = vunpack.c.l.b16 %v404
        %v596 = vunpack.c.l.b16 %v405
        %v597 = vunpack.c.h.b16 %v405
        %v598 = vunpack.c.l.b16 %v406
        %v599 = vunpack.c.l.b16 %v407
        %v600 = vunpack.c.h.b16 %v407
        %v601 = vunpack.c.l.b16 %v408
        %v602 = vunpack.c.l.b16 %v409
        %v603 = vunpack.c.h.b16 %v409
        %v604 = vunpack.c.l.b16 %v410
        %v605 = vunpack.c.l.b16 %v411
        %v606 = vunpack.c.h.b16 %v411
        %v607 = vunpack.c.l.b16 %v412
        %v608 = vunpack.c.l.b16 %v413
        %v609 = vunpack.c.h.b16 %v413
        %v610 = vunpack.c.l.b16 %v414
        %v611 = vunpack.c.l.b16 %v415
        %v612 = vunpack.c.h.b16 %v415
        %v613 = vunpack.c.l.b16 %v416
        %v614 = vunpack.c.l.b16 %v417
        %v615 = vunpack.c.h.b16 %v417
        %v616 = vunpack.c.l.b16 %v418
        %v617 = vunpack.c.l.b16 %v419
        %v618 = vunpack.c.h.b16 %v419
        %v619 = vunpack.c.l.b16 %v420
        %v620 = vunpack.c.l.b16 %v421
        %v621 = vunpack.c.h.b16 %v421
        %v622 = vunpack.c.l.b16 %v422
        %v623 = vunpack.c.l.b16 %v423
        %v624 = vunpack.c.h.b16 %v423
        %v625 = vunpack.c.l.b16 %v424
        %v626 = vunpack.c.l.b16 %v425
        %v627 = vunpack.c.h.b16 %v425
        %v628 = vunpack.c.l.b16 %v426
        %v629 = vunpack.c.l.b16 %v427
        %v630 = vunpack.c.h.b16 %v427
        %v631 = vunpack.c.l.b16 %v428
        %v632 = vpack.c.b16 %v539, %v536
        %v633 = vpack.c.b16 %v540, %v537
        %v634 = vpack.c.b16 %v541, %v538
        %v635 = vpack.c.b16 %v545, %v542
        %v636 = vpack.c.b16 %v546, %v543
        %v637 = vpack.c.b16 %v547, %v544
        %v638 = vpack.c.b16 %v551, %v548
        %v639 = vpack.c.b16 %v552, %v549
        %v640 = vpack.c.b16 %v553, %v550
        %v641 = vpack.c.b16 %v557, %v554
        %v642 = vpack.c.b16 %v558, %v555
        %v643 = vpack.c.b16 %v559, %v556
        %v644 = vpack.c.b16 %v563, %v560
        %v645 = vpack.c.b16 %v564, %v561
        %v646 = vpack.c.b16 %v565, %v562
        %v647 = vpack.c.b16 %v569, %v566
        %v648 = vpack.c.b16 %v570, %v567
        %v649 = vpack.c.b16 %v571, %v568
        %v650 = vpack.c.b16 %v575, %v572
        %v651 = vpack.c.b16 %v576, %v573
        %v652 = vpack.c.b16 %v577, %v574
        %v653 = vpack.c.b16 %v581, %v578
        %v654 = vpack.c.b16 %v582, %v579
        %v655 = vpack.c.b16 %v583, %v580
        %v656 = vpack.c.b16 %v587, %v584
        %v657 = vpack.c.b16 %v588, %v585
        %v658 = vpack.c.b16 %v589, %v586
        %v659 = vpack.c.b16 %v593, %v590
        %v660 = vpack.c.b16 %v594, %v591
        %v661 = vpack.c.b16 %v595, %v592
        %v662 = vpack.c.b16 %v599, %v596
        %v663 = vpack.c.b16 %v600, %v597
        %v664 = vpack.c.b16 %v601, %v598
        %v665 = vpack.c.b16 %v605, %v602
        %v666 = vpack.c.b16 %v606, %v603
        %v667 = vpack.c.b16 %v607, %v604
        %v668 = vpack.c.b16 %v611, %v608
        %v669 = vpack.c.b16 %v612, %v609
        %v670 = vpack.c.b16 %v613, %v610
        %v671 = vpack.c.b16 %v617, %v614
        %v672 = vpack.c.b16 %v618, %v615
        %v673 = vpack.c.b16 %v619, %v616
        %v674 = vpack.c.b16 %v623, %v620
        %v675 = vpack.c.b16 %v624, %v621
        %v676 = vpack.c.b16 %v625, %v622
        %v677 = vpack.c.b16 %v629, %v626
        %v678 = vpack.c.b16 %v630, %v627
        %v679 = vpack.c.b16 %v631, %v628
        %v748 = vunpack.c.l.b16 %v429
        %v749 = vunpack.c.l.b16 %v430
        %v750 = vunpack.c.l.b16 %v431
        %v751 = vunpack.c.l.b16 %v432
        %v752 = vunpack.c.l.b16 %v433
        %v753 = vunpack.c.l.b16 %v434
        %v754 = vunpack.c.l.b16 %v435
        %v755 = vunpack.c.l.b16 %v436
        %v756 = vunpack.c.l.b16 %v437
        %v757 = vunpack.c.l.b16 %v438
        %v758 = vunpack.c.l.b16 %v439
        %v759 = vunpack.c.l.b16 %v440
        %v760 = vunpack.c.l.b16 %v441
        %v761 = vunpack.c.l.b16 %v442
        %v762 = vunpack.c.l.b16 %v443
        %v763 = vunpack.c.l.b16 %v444
        %v764 = vunpack.c.l.b16 %v445
        %v765 = vunpack.c.l.b16 %v446
        %v766 = vunpack.c.l.b16 %v447
        %v767 = vunpack.c.l.b16 %v448
        %v768 = vunpack.c.l.b16 %v449
        %v769 = vunpack.c.l.b16 %v450
        %v770 = vunpack.c.l.b16 %v451
        %v771 = vunpack.c.l.b16 %v452
        %v772 = vunpack.c.l.b16 %v453
        %v773 = vunpack.c.l.b16 %v454
        %v774 = vunpack.c.l.b16 %v455
        %v775 = vunpack.c.l.b16 %v456
        %v776 = vunpack.c.l.b16 %v457
        %v777 = vunpack.c.l.b16 %v458
        %v778 = vunpack.c.l.b16 %v459
        %v779 = vunpack.c.l.b16 %v460
        %v780 = vunpack.c.l.b16 %v461
        %v781 = vunpack.c.l.b16 %v462
        %v782 = vunpack.c.l.b16 %v463
        %v783 = vunpack.c.l.b16 %v464
        %v784 = vpack.c.b16 %v749, %v748
        %v785 = vpack.c.b16 %v751, %v750
        %v786 = vpack.c.b16 %v753, %v752
        %v787 = vpack.c.b16 %v755, %v754
        %v788 = vpack.c.b16 %v757, %v756
        %v789 = vpack.c.b16 %v759, %v758
        %v790 = vpack.c.b16 %v761, %v760
        %v791 = vpack.c.b16 %v763, %v762
        %v792 = vpack.c.b16 %v765, %v764
        %v793 = vpack.c.b16 %v767, %v766
        %v794 = vpack.c.b16 %v769, %v768
        %v795 = vpack.c.b16 %v771, %v770
        %v796 = vpack.c.b16 %v773, %v772
        %v797 = vpack.c.b16 %v775, %v774
        %v798 = vpack.c.b16 %v777, %v776
        %v799 = vpack.c.b16 %v779, %v778
        %v800 = vpack.c.b16 %v781, %v780
        %v801 = vpack.c.b16 %v783, %v782
        %vm820 = vcmask 261120
        %v822 = vsel %vm820, %v634, 0
        %v825 = vsel %vm820, %v637, 0
        %v828 = vsel %vm820, %v640, 0
        %v831 = vsel %vm820, %v643, 0
        %v834 = vsel %vm820, %v646, 0
        %v837 = vsel %vm820, %v649, 0
        %v840 = vsel %vm820, %v652, 0
        %v843 = vsel %vm820, %v655, 0
        %v846 = vsel %vm820, %v658, 0
        %v849 = vsel %vm820, %v661, 0
        %v852 = vsel %vm820, %v664, 0
        %v855 = vsel %vm820, %v667, 0
        %v858 = vsel %vm820, %v670, 0
        %v861 = vsel %vm820, %v673, 0
        %v864 = vsel %vm820, %v676, 0
        %v867 = vsel %vm820, %v679, 0
        %869 = vmatprep.subr.bf16.mxu0 0
        %870 = vmatpush1.bf16.msra.mxu0 %v784
        %871 = vmatprep.subr.bf16.mxu0 0
        %872 = vmatpush1.bf16.msra.mxu0 %v785
        %873 = vmatprep.subr.bf16.mxu0 0
        %874 = vmatpush1.bf16.msra.mxu0 %v786
        %875 = vmatprep.subr.bf16.mxu0 0
        %876 = vmatpush1.bf16.msra.mxu0 %v787
        %877 = vmatprep.subr.bf16.mxu0 0
        %878 = vmatpush1.bf16.msra.mxu0 %v788
        %879 = vmatprep.subr.bf16.mxu0 0
        %880 = vmatpush1.bf16.msra.mxu0 %v789
        %881 = vmatprep.subr.bf16.mxu0 0
        %882 = vmatpush1.bf16.msra.mxu0 %v790
        %883 = vmatprep.subr.bf16.mxu0 0
        %884 = vmatpush1.bf16.msra.mxu0 %v791
        %885 = vmatprep.subr.bf16.mxu0 0
        %886 = vmatpush1.bf16.msra.mxu0 %v792
        %887 = vmatprep.subr.bf16.mxu0 0
        %888 = vmatpush1.bf16.msra.mxu0 %v793
        %889 = vmatprep.subr.bf16.mxu0 0
        %890 = vmatpush1.bf16.msra.mxu0 %v794
        %891 = vmatprep.subr.bf16.mxu0 0
        %892 = vmatpush1.bf16.msra.mxu0 %v795
        %893 = vmatprep.subr.bf16.mxu0 0
        %894 = vmatpush1.bf16.msra.mxu0 %v796
        %895 = vmatprep.subr.bf16.mxu0 0
        %896 = vmatpush1.bf16.msra.mxu0 %v797
        %897 = vmatprep.subr.bf16.mxu0 0
        %898 = vmatpush1.bf16.msra.mxu0 %v798
        %899 = vmatprep.subr.bf16.mxu0 0
        %900 = vmatpush1.bf16.msra.mxu0 %v799
        %901 = vmatprep.mubr.bf16.mxu0 %v633
        %902 = vmatmul.mubr.bf16.gmra.mrb[0].mxu0 %v632
        %v903 = vpop.f32.mrb[0].mxu0
        %v904 = vadd.f32 %v470, %v903
        %v905 = vpop.f32.mrb[0].mxu0
        %v906 = vpop.f32.mrb[0].mxu0
        %v907 = vadd.f32 %v470, %v906
        %v908 = vpop.f32.mrb[0].mxu0
        %909 = vmatprep.mubr.bf16.mxu0 %v636
        %910 = vmatmul.mubr.bf16.gmra.mrb[0].mxu0 %v635
        %v911 = vpop.f32.mrb[0].mxu0
        %v912 = vadd.f32 %v470, %v911
        %v913 = vpop.f32.mrb[0].mxu0
        %v914 = vpop.f32.mrb[0].mxu0
        %v915 = vadd.f32 %v470, %v914
        %v916 = vpop.f32.mrb[0].mxu0
        %917 = vmatprep.mubr.bf16.mxu0 %v639
        %918 = vmatmul.mubr.bf16.gmra.mrb[0].mxu0 %v638
        %v919 = vpop.f32.mrb[0].mxu0
        %v920 = vadd.f32 %v470, %v919
        %v921 = vpop.f32.mrb[0].mxu0
        %v922 = vpop.f32.mrb[0].mxu0
        %v923 = vadd.f32 %v470, %v922
        %v924 = vpop.f32.mrb[0].mxu0
        %925 = vmatprep.mubr.bf16.mxu0 %v642
        %926 = vmatmul.mubr.bf16.gmra.mrb[0].mxu0 %v641
        %v927 = vpop.f32.mrb[0].mxu0
        %v928 = vadd.f32 %v470, %v927
        %v929 = vpop.f32.mrb[0].mxu0
        %v930 = vpop.f32.mrb[0].mxu0
        %v931 = vadd.f32 %v470, %v930
        %v932 = vpop.f32.mrb[0].mxu0
        %933 = vmatprep.mubr.bf16.mxu0 %v645
        %934 = vmatmul.mubr.bf16.gmra.mrb[0].mxu0 %v644
        %v935 = vpop.f32.mrb[0].mxu0
        %v936 = vadd.f32 %v470, %v935
        %v937 = vpop.f32.mrb[0].mxu0
        %v938 = vpop.f32.mrb[0].mxu0
        %v939 = vadd.f32 %v470, %v938
        %v940 = vpop.f32.mrb[0].mxu0
        %941 = vmatprep.mubr.bf16.mxu0 %v648
        %942 = vmatmul.mubr.bf16.gmra.mrb[0].mxu0 %v647
        %v943 = vpop.f32.mrb[0].mxu0
        %v944 = vadd.f32 %v470, %v943
        %v945 = vpop.f32.mrb[0].mxu0
        %v946 = vpop.f32.mrb[0].mxu0
        %v947 = vadd.f32 %v470, %v946
        %v948 = vpop.f32.mrb[0].mxu0
        %949 = vmatprep.mubr.bf16.mxu0 %v651
        %950 = vmatmul.mubr.bf16.gmra.mrb[0].mxu0 %v650
        %v951 = vpop.f32.mrb[0].mxu0
        %v952 = vadd.f32 %v470, %v951
        %v953 = vpop.f32.mrb[0].mxu0
        %v954 = vpop.f32.mrb[0].mxu0
        %v955 = vadd.f32 %v470, %v954
        %v956 = vpop.f32.mrb[0].mxu0
        %957 = vmatprep.mubr.bf16.mxu0 %v654
        %958 = vmatmul.mubr.bf16.gmra.mrb[0].mxu0 %v653
        %v959 = vpop.f32.mrb[0].mxu0
        %v960 = vadd.f32 %v470, %v959
        %v961 = vpop.f32.mrb[0].mxu0
        %v962 = vpop.f32.mrb[0].mxu0
        %v963 = vadd.f32 %v470, %v962
        %v964 = vpop.f32.mrb[0].mxu0
        %965 = vmatprep.mubr.bf16.mxu0 %v657
        %966 = vmatmul.mubr.bf16.gmra.mrb[0].mxu0 %v656
        %v967 = vpop.f32.mrb[0].mxu0
        %v968 = vadd.f32 %v470, %v967
        %v969 = vpop.f32.mrb[0].mxu0
        %v970 = vpop.f32.mrb[0].mxu0
        %v971 = vadd.f32 %v470, %v970
        %v972 = vpop.f32.mrb[0].mxu0
        %973 = vmatprep.mubr.bf16.mxu0 %v660
        %974 = vmatmul.mubr.bf16.gmra.mrb[0].mxu0 %v659
        %v975 = vpop.f32.mrb[0].mxu0
        %v976 = vadd.f32 %v470, %v975
        %v977 = vpop.f32.mrb[0].mxu0
        %v978 = vpop.f32.mrb[0].mxu0
        %v979 = vadd.f32 %v470, %v978
        %v980 = vpop.f32.mrb[0].mxu0
        %981 = vmatprep.mubr.bf16.mxu0 %v663
        %982 = vmatmul.mubr.bf16.gmra.mrb[0].mxu0 %v662
        %v983 = vpop.f32.mrb[0].mxu0
        %v984 = vadd.f32 %v470, %v983
        %v985 = vpop.f32.mrb[0].mxu0
        %v986 = vpop.f32.mrb[0].mxu0
        %v987 = vadd.f32 %v470, %v986
        %v988 = vpop.f32.mrb[0].mxu0
        %989 = vmatprep.mubr.bf16.mxu0 %v666
        %990 = vmatmul.mubr.bf16.gmra.mrb[0].mxu0 %v665
        %v991 = vpop.f32.mrb[0].mxu0
        %v992 = vadd.f32 %v470, %v991
        %v993 = vpop.f32.mrb[0].mxu0
        %v994 = vpop.f32.mrb[0].mxu0
        %v995 = vadd.f32 %v470, %v994
        %v996 = vpop.f32.mrb[0].mxu0
        %997 = vmatprep.mubr.bf16.mxu0 %v669
        %998 = vmatmul.mubr.bf16.gmra.mrb[0].mxu0 %v668
        %v999 = vpop.f32.mrb[0].mxu0
        %v1000 = vadd.f32 %v470, %v999
        %v1001 = vpop.f32.mrb[0].mxu0
        %v1002 = vpop.f32.mrb[0].mxu0
        %v1003 = vadd.f32 %v470, %v1002
        %v1004 = vpop.f32.mrb[0].mxu0
        %1005 = vmatprep.mubr.bf16.mxu0 %v672
        %1006 = vmatmul.mubr.bf16.gmra.mrb[0].mxu0 %v671
        %v1007 = vpop.f32.mrb[0].mxu0
        %v1008 = vadd.f32 %v470, %v1007
        %v1009 = vpop.f32.mrb[0].mxu0
        %v1010 = vpop.f32.mrb[0].mxu0
        %v1011 = vadd.f32 %v470, %v1010
        %v1012 = vpop.f32.mrb[0].mxu0
        %1013 = vmatprep.mubr.bf16.mxu0 %v675
        %1014 = vmatmul.mubr.bf16.gmra.mrb[0].mxu0 %v674
        %v1015 = vpop.f32.mrb[0].mxu0
        %v1016 = vadd.f32 %v470, %v1015
        %v1017 = vpop.f32.mrb[0].mxu0
        %v1018 = vpop.f32.mrb[0].mxu0
        %v1019 = vadd.f32 %v470, %v1018
        %v1020 = vpop.f32.mrb[0].mxu0
        %1021 = vmatprep.mubr.bf16.mxu0 %v678
        %1022 = vmatmul.mubr.bf16.gmra.mrb[0].mxu0 %v677
        %v1023 = vpop.f32.mrb[0].mxu0
        %v1024 = vadd.f32 %v470, %v1023
        %v1025 = vpop.f32.mrb[0].mxu0
        %v1026 = vpop.f32.mrb[0].mxu0
        %v1027 = vadd.f32 %v470, %v1026
        %v1028 = vpop.f32.mrb[0].mxu0
        %1029 = vdwg.mxu0
        %1030 = vmatprep.subr.bf16.mxu0 0
        %1031 = vmatpush1.bf16.msra.mxu0 %v800
        %1032 = vmatprep.subr.bf16.mxu0 0
        %1033 = vmatpush1.bf16.msra.mxu0 %v801
        %1034 = vmatprep.subr.bf16.mxu0 0
        %1035 = vmatpush1.bf16.msra.mxu0 0
        %1036 = vmatprep.subr.bf16.mxu0 0
        %1037 = vmatpush1.bf16.msra.mxu0 0
        %1038 = vmatprep.subr.bf16.mxu0 0
        %1039 = vmatpush1.bf16.msra.mxu0 0
        %1040 = vmatprep.subr.bf16.mxu0 0
        %1041 = vmatpush1.bf16.msra.mxu0 0
        %1042 = vmatprep.subr.bf16.mxu0 0
        %1043 = vmatpush1.bf16.msra.mxu0 0
        %1044 = vmatprep.subr.bf16.mxu0 0
        %1045 = vmatpush1.bf16.msra.mxu0 0
        %1046 = vmatprep.subr.bf16.mxu0 0
        %1047 = vmatpush1.bf16.msra.mxu0 0
        %1048 = vmatprep.subr.bf16.mxu0 0
        %1049 = vmatpush1.bf16.msra.mxu0 0
        %1050 = vmatprep.subr.bf16.mxu0 0
        %1051 = vmatpush1.bf16.msra.mxu0 0
        %1052 = vmatprep.subr.bf16.mxu0 0
        %1053 = vmatpush1.bf16.msra.mxu0 0
        %1054 = vmatprep.subr.bf16.mxu0 0
        %1055 = vmatpush1.bf16.msra.mxu0 0
        %1056 = vmatprep.subr.bf16.mxu0 0
        %1057 = vmatpush1.bf16.msra.mxu0 0
        %1058 = vmatprep.subr.bf16.mxu0 0
        %1059 = vmatpush1.bf16.msra.mxu0 0
        %1060 = vmatprep.subr.bf16.mxu0 0
        %1061 = vmatpush1.bf16.msra.mxu0 0
        %1062 = vmatprep.mubr.bf16.mxu0 0
        %1063 = vmatmul.mubr.bf16.gmra.mrb[0].mxu0 %v822
        %v1064 = vpop.f32.mrb[0].mxu0
        %v1065 = vadd.f32 %v904, %v1064
        %v1066 = vpop.f32.mrb[0].mxu0
        %v1067 = vpop.f32.mrb[0].mxu0
        %v1068 = vadd.f32 %v907, %v1067
        %v1069 = vpop.f32.mrb[0].mxu0
        %1070 = vmatprep.mubr.bf16.mxu0 0
        %1071 = vmatmul.mubr.bf16.gmra.mrb[0].mxu0 %v825
        %v1072 = vpop.f32.mrb[0].mxu0
        %v1073 = vadd.f32 %v912, %v1072
        %v1074 = vpop.f32.mrb[0].mxu0
        %v1075 = vpop.f32.mrb[0].mxu0
        %v1076 = vadd.f32 %v915, %v1075
        %v1077 = vpop.f32.mrb[0].mxu0
        %1078 = vmatprep.mubr.bf16.mxu0 0
        %1079 = vmatmul.mubr.bf16.gmra.mrb[0].mxu0 %v828
        %v1080 = vpop.f32.mrb[0].mxu0
        %v1081 = vadd.f32 %v920, %v1080
        %v1082 = vpop.f32.mrb[0].mxu0
        %v1083 = vpop.f32.mrb[0].mxu0
        %v1084 = vadd.f32 %v923, %v1083
        %v1085 = vpop.f32.mrb[0].mxu0
        %1086 = vmatprep.mubr.bf16.mxu0 0
        %1087 = vmatmul.mubr.bf16.gmra.mrb[0].mxu0 %v831
        %v1088 = vpop.f32.mrb[0].mxu0
        %v1089 = vadd.f32 %v928, %v1088
        %v1090 = vpop.f32.mrb[0].mxu0
        %v1091 = vpop.f32.mrb[0].mxu0
        %v1092 = vadd.f32 %v931, %v1091
        %v1093 = vpop.f32.mrb[0].mxu0
        %1094 = vmatprep.mubr.bf16.mxu0 0
        %1095 = vmatmul.mubr.bf16.gmra.mrb[0].mxu0 %v834
        %v1096 = vpop.f32.mrb[0].mxu0
        %v1097 = vadd.f32 %v936, %v1096
        %v1098 = vpop.f32.mrb[0].mxu0
        %v1099 = vpop.f32.mrb[0].mxu0
        %v1100 = vadd.f32 %v939, %v1099
        %v1101 = vpop.f32.mrb[0].mxu0
        %1102 = vmatprep.mubr.bf16.mxu0 0
        %1103 = vmatmul.mubr.bf16.gmra.mrb[0].mxu0 %v837
        %v1104 = vpop.f32.mrb[0].mxu0
        %v1105 = vadd.f32 %v944, %v1104
        %v1106 = vpop.f32.mrb[0].mxu0
        %v1107 = vpop.f32.mrb[0].mxu0
        %v1108 = vadd.f32 %v947, %v1107
        %v1109 = vpop.f32.mrb[0].mxu0
        %1110 = vmatprep.mubr.bf16.mxu0 0
        %1111 = vmatmul.mubr.bf16.gmra.mrb[0].mxu0 %v840
        %v1112 = vpop.f32.mrb[0].mxu0
        %v1113 = vadd.f32 %v952, %v1112
        %v1114 = vpop.f32.mrb[0].mxu0
        %v1115 = vpop.f32.mrb[0].mxu0
        %v1116 = vadd.f32 %v955, %v1115
        %v1117 = vpop.f32.mrb[0].mxu0
        %1118 = vmatprep.mubr.bf16.mxu0 0
        %1119 = vmatmul.mubr.bf16.gmra.mrb[0].mxu0 %v843
        %v1120 = vpop.f32.mrb[0].mxu0
        %v1121 = vadd.f32 %v960, %v1120
        %v1122 = vpop.f32.mrb[0].mxu0
        %v1123 = vpop.f32.mrb[0].mxu0
        %v1124 = vadd.f32 %v963, %v1123
        %v1125 = vpop.f32.mrb[0].mxu0
        %1126 = vmatprep.mubr.bf16.mxu0 0
        %1127 = vmatmul.mubr.bf16.gmra.mrb[0].mxu0 %v846
        %v1128 = vpop.f32.mrb[0].mxu0
        %v1129 = vadd.f32 %v968, %v1128
        %v1130 = vpop.f32.mrb[0].mxu0
        %v1131 = vpop.f32.mrb[0].mxu0
        %v1132 = vadd.f32 %v971, %v1131
        %v1133 = vpop.f32.mrb[0].mxu0
        %1134 = vmatprep.mubr.bf16.mxu0 0
        %1135 = vmatmul.mubr.bf16.gmra.mrb[0].mxu0 %v849
        %v1136 = vpop.f32.mrb[0].mxu0
        %v1137 = vadd.f32 %v976, %v1136
        %v1138 = vpop.f32.mrb[0].mxu0
        %v1139 = vpop.f32.mrb[0].mxu0
        %v1140 = vadd.f32 %v979, %v1139
        %v1141 = vpop.f32.mrb[0].mxu0
        %1142 = vmatprep.mubr.bf16.mxu0 0
        %1143 = vmatmul.mubr.bf16.gmra.mrb[0].mxu0 %v852
        %v1144 = vpop.f32.mrb[0].mxu0
        %v1145 = vadd.f32 %v984, %v1144
        %v1146 = vpop.f32.mrb[0].mxu0
        %v1147 = vpop.f32.mrb[0].mxu0
        %v1148 = vadd.f32 %v987, %v1147
        %v1149 = vpop.f32.mrb[0].mxu0
        %1150 = vmatprep.mubr.bf16.mxu0 0
        %1151 = vmatmul.mubr.bf16.gmra.mrb[0].mxu0 %v855
        %v1152 = vpop.f32.mrb[0].mxu0
        %v1153 = vadd.f32 %v992, %v1152
        %v1154 = vpop.f32.mrb[0].mxu0
        %v1155 = vpop.f32.mrb[0].mxu0
        %v1156 = vadd.f32 %v995, %v1155
        %v1157 = vpop.f32.mrb[0].mxu0
        %1158 = vmatprep.mubr.bf16.mxu0 0
        %1159 = vmatmul.mubr.bf16.gmra.mrb[0].mxu0 %v858
        %v1160 = vpop.f32.mrb[0].mxu0
        %v1161 = vadd.f32 %v1000, %v1160
        %v1162 = vpop.f32.mrb[0].mxu0
        %v1163 = vpop.f32.mrb[0].mxu0
        %v1164 = vadd.f32 %v1003, %v1163
        %v1165 = vpop.f32.mrb[0].mxu0
        %1166 = vmatprep.mubr.bf16.mxu0 0
        %1167 = vmatmul.mubr.bf16.gmra.mrb[0].mxu0 %v861
        %v1168 = vpop.f32.mrb[0].mxu0
        %v1169 = vadd.f32 %v1008, %v1168
        %v1170 = vpop.f32.mrb[0].mxu0
        %v1171 = vpop.f32.mrb[0].mxu0
        %v1172 = vadd.f32 %v1011, %v1171
        %v1173 = vpop.f32.mrb[0].mxu0
        %1174 = vmatprep.mubr.bf16.mxu0 0
        %1175 = vmatmul.mubr.bf16.gmra.mrb[0].mxu0 %v864
        %v1176 = vpop.f32.mrb[0].mxu0
        %v1177 = vadd.f32 %v1016, %v1176
        %v1178 = vpop.f32.mrb[0].mxu0
        %v1179 = vpop.f32.mrb[0].mxu0
        %v1180 = vadd.f32 %v1019, %v1179
        %v1181 = vpop.f32.mrb[0].mxu0
        %1182 = vmatprep.mubr.bf16.mxu0 0
        %1183 = vmatmul.mubr.bf16.gmra.mrb[0].mxu0 %v867
        %v1184 = vpop.f32.mrb[0].mxu0
        %v1185 = vadd.f32 %v1024, %v1184
        %v1186 = vpop.f32.mrb[0].mxu0
        %v1187 = vpop.f32.mrb[0].mxu0
        %v1188 = vadd.f32 %v1027, %v1187
        %v1189 = vpop.f32.mrb[0].mxu0
        %1190 = vdwg.mxu0
        %v1191 = vld [vmem:[%s358] sm:$0xff]
        %v1192 = vld [vmem:[%s358 + $0x8] sm:$0xff]
        %v1193 = vld [vmem:[%s358 + $0x10] sm:$0xff]
        %v1194 = vld [vmem:[%s358 + $0x18] sm:$0xff]
        %v1195 = vld [vmem:[%s358 + $0x20] sm:$0xff]
        %v1196 = vld [vmem:[%s358 + $0x28] sm:$0xff]
        %v1197 = vld [vmem:[%s358 + $0x30] sm:$0xff]
        %v1198 = vld [vmem:[%s358 + $0x38] sm:$0xff]
        %v1199 = vld [vmem:[%s358 + $0x40] sm:$0xff]
        %v1200 = vld [vmem:[%s358 + $0x48] sm:$0xff]
        %v1201 = vld [vmem:[%s358 + $0x50] sm:$0xff]
        %v1202 = vld [vmem:[%s358 + $0x58] sm:$0xff]
        %v1203 = vld [vmem:[%s358 + $0x60] sm:$0xff]
        %v1204 = vld [vmem:[%s358 + $0x68] sm:$0xff]
        %v1205 = vld [vmem:[%s358 + $0x70] sm:$0xff]
        %v1206 = vld [vmem:[%s358 + $0x78] sm:$0xff]
        %v1207 = vld [vmem:[%s358 + $0x80] sm:$0xff]
        %v1208 = vld [vmem:[%s358 + $0x88] sm:$0xff]
        %v1209 = vld [vmem:[%s358 + $0x90] sm:$0xff]
        %v1210 = vld [vmem:[%s358 + $0x98] sm:$0xff]
        %v1211 = vld [vmem:[%s358 + $0xa0] sm:$0xff]
        %v1212 = vld [vmem:[%s358 + $0xa8] sm:$0xff]
        %v1213 = vld [vmem:[%s358 + $0xb0] sm:$0xff]
        %v1214 = vld [vmem:[%s358 + $0xb8] sm:$0xff]
        %v1215 = vld [vmem:[%s358 + $0xc0] sm:$0xff]
        %v1216 = vld [vmem:[%s358 + $0xc8] sm:$0xff]
        %v1217 = vld [vmem:[%s358 + $0xd0] sm:$0xff]
        %v1218 = vld [vmem:[%s358 + $0xd8] sm:$0xff]
        %v1219 = vld [vmem:[%s358 + $0xe0] sm:$0xff]
        %v1220 = vld [vmem:[%s358 + $0xe8] sm:$0xff]
        %v1221 = vld [vmem:[%s358 + $0xf0] sm:$0xff]
        %v1222 = vld [vmem:[%s358 + $0xf8] sm:$0xff]
        %v1223 = vadd.f32 %v1191, %v1065
        %v1224 = vadd.f32 %v1192, %v1068
        %v1225 = vadd.f32 %v1193, %v1073
        %v1226 = vadd.f32 %v1194, %v1076
        %v1227 = vadd.f32 %v1195, %v1081
        %v1228 = vadd.f32 %v1196, %v1084
        %v1229 = vadd.f32 %v1197, %v1089
        %v1230 = vadd.f32 %v1198, %v1092
        %v1231 = vadd.f32 %v1199, %v1097
        %v1232 = vadd.f32 %v1200, %v1100
        %v1233 = vadd.f32 %v1201, %v1105
        %v1234 = vadd.f32 %v1202, %v1108
        %v1235 = vadd.f32 %v1203, %v1113
        %v1236 = vadd.f32 %v1204, %v1116
        %v1237 = vadd.f32 %v1205, %v1121
        %v1238 = vadd.f32 %v1206, %v1124
        %v1239 = vadd.f32 %v1207, %v1129
        %v1240 = vadd.f32 %v1208, %v1132
        %v1241 = vadd.f32 %v1209, %v1137
        %v1242 = vadd.f32 %v1210, %v1140
        %v1243 = vadd.f32 %v1211, %v1145
        %v1244 = vadd.f32 %v1212, %v1148
        %v1245 = vadd.f32 %v1213, %v1153
        %v1246 = vadd.f32 %v1214, %v1156
        %v1247 = vadd.f32 %v1215, %v1161
        %v1248 = vadd.f32 %v1216, %v1164
        %v1249 = vadd.f32 %v1217, %v1169
        %v1250 = vadd.f32 %v1218, %v1172
        %v1251 = vadd.f32 %v1219, %v1177
        %v1252 = vadd.f32 %v1220, %v1180
        %v1253 = vadd.f32 %v1221, %v1185
        %v1254 = vadd.f32 %v1222, %v1188
        %v1255 = vsel %vm820, %v1223, 0.0
        %v1256 = vsel %vm820, %v1224, 0.0
        %v1257 = vadd.f32 %v1255, %v1256
        %v1258 = vsel %vm820, %v1225, 0.0
        %v1259 = vadd.f32 %v1257, %v1258
        %v1260 = vsel %vm820, %v1226, 0.0
        %v1261 = vadd.f32 %v1259, %v1260
        %v1262 = vsel %vm820, %v1227, 0.0
        %v1263 = vadd.f32 %v1261, %v1262
        %v1264 = vsel %vm820, %v1228, 0.0
        %v1265 = vadd.f32 %v1263, %v1264
        %v1266 = vsel %vm820, %v1229, 0.0
        %v1267 = vadd.f32 %v1265, %v1266
        %v1268 = vsel %vm820, %v1230, 0.0
        %v1269 = vadd.f32 %v1267, %v1268
        %v1270 = vsel %vm820, %v1231, 0.0
        %v1271 = vadd.f32 %v1269, %v1270
        %v1272 = vsel %vm820, %v1232, 0.0
        %v1273 = vadd.f32 %v1271, %v1272
        %v1274 = vsel %vm820, %v1233, 0.0
        %v1275 = vadd.f32 %v1273, %v1274
        %v1276 = vsel %vm820, %v1234, 0.0
        %v1277 = vadd.f32 %v1275, %v1276
        %v1278 = vsel %vm820, %v1235, 0.0
        %v1279 = vadd.f32 %v1277, %v1278
        %v1280 = vsel %vm820, %v1236, 0.0
        %v1281 = vadd.f32 %v1279, %v1280
        %v1282 = vsel %vm820, %v1237, 0.0
        %v1283 = vadd.f32 %v1281, %v1282
        %v1284 = vsel %vm820, %v1238, 0.0
        %v1285 = vadd.f32 %v1283, %v1284
        %v1286 = vsel %vm820, %v1239, 0.0
        %v1287 = vadd.f32 %v1285, %v1286
        %v1288 = vsel %vm820, %v1240, 0.0
        %v1289 = vadd.f32 %v1287, %v1288
        %v1290 = vsel %vm820, %v1241, 0.0
        %v1291 = vadd.f32 %v1289, %v1290
        %v1292 = vsel %vm820, %v1242, 0.0
        %v1293 = vadd.f32 %v1291, %v1292
        %v1294 = vsel %vm820, %v1243, 0.0
        %v1295 = vadd.f32 %v1293, %v1294
        %v1296 = vsel %vm820, %v1244, 0.0
        %v1297 = vadd.f32 %v1295, %v1296
        %v1298 = vsel %vm820, %v1245, 0.0
        %v1299 = vadd.f32 %v1297, %v1298
        %v1300 = vsel %vm820, %v1246, 0.0
        %v1301 = vadd.f32 %v1299, %v1300
        %v1302 = vsel %vm820, %v1247, 0.0
        %v1303 = vadd.f32 %v1301, %v1302
        %v1304 = vsel %vm820, %v1248, 0.0
        %v1305 = vadd.f32 %v1303, %v1304
        %v1306 = vsel %vm820, %v1249, 0.0
        %v1307 = vadd.f32 %v1305, %v1306
        %v1308 = vsel %vm820, %v1250, 0.0
        %v1309 = vadd.f32 %v1307, %v1308
        %v1310 = vsel %vm820, %v1251, 0.0
        %v1311 = vadd.f32 %v1309, %v1310
        %v1312 = vsel %vm820, %v1252, 0.0
        %v1313 = vadd.f32 %v1311, %v1312
        %v1314 = vsel %vm820, %v1253, 0.0
        %v1315 = vadd.f32 %v1313, %v1314
        %v1316 = vsel %vm820, %v1254, 0.0
        %v1317 = vadd.f32 %v1315, %v1316
        %v1318 = vrot.slane %v1317, 4
        %v1319 = vadd.f32 %v1317, %v1318
        %v1320 = vrot.slane %v1319, 2
        %v1321 = vadd.f32 %v1319, %v1320
        %v1322 = vrot.slane %v1321, 1
        %v1323 = vadd.f32 %v1321, %v1322
        %v1324 = vrcp.pop 256.0
        %v1325 = vmul.f32 %v1323, %v1324
        %v1326 = vsub.f32 %v1223, %v1325
        %v1327 = vsub.f32 %v1224, %v1325
        %v1328 = vsub.f32 %v1225, %v1325
        %v1329 = vsub.f32 %v1226, %v1325
        %v1330 = vsub.f32 %v1227, %v1325
        %v1331 = vsub.f32 %v1228, %v1325
        %v1332 = vsub.f32 %v1229, %v1325
        %v1333 = vsub.f32 %v1230, %v1325
        %v1334 = vsub.f32 %v1231, %v1325
        %v1335 = vsub.f32 %v1232, %v1325
        %v1336 = vsub.f32 %v1233, %v1325
        %v1337 = vsub.f32 %v1234, %v1325
        %v1338 = vsub.f32 %v1235, %v1325
        %v1339 = vsub.f32 %v1236, %v1325
        %v1340 = vsub.f32 %v1237, %v1325
        %v1341 = vsub.f32 %v1238, %v1325
        %v1342 = vsub.f32 %v1239, %v1325
        %v1343 = vsub.f32 %v1240, %v1325
        %v1344 = vsub.f32 %v1241, %v1325
        %v1345 = vsub.f32 %v1242, %v1325
        %v1346 = vsub.f32 %v1243, %v1325
        %v1347 = vsub.f32 %v1244, %v1325
        %v1348 = vsub.f32 %v1245, %v1325
        %v1349 = vsub.f32 %v1246, %v1325
        %v1350 = vsub.f32 %v1247, %v1325
        %v1351 = vsub.f32 %v1248, %v1325
        %v1352 = vsub.f32 %v1249, %v1325
        %v1353 = vsub.f32 %v1250, %v1325
        %v1354 = vsub.f32 %v1251, %v1325
        %v1355 = vsub.f32 %v1252, %v1325
        %v1356 = vsub.f32 %v1253, %v1325
        %v1357 = vsub.f32 %v1254, %v1325
        %v1358 = vmul.f32 %v1326, %v1326
        %v1359 = vmul.f32 %v1327, %v1327
        %v1360 = vmul.f32 %v1328, %v1328
        %v1361 = vmul.f32 %v1329, %v1329
        %v1362 = vmul.f32 %v1330, %v1330
        %v1363 = vmul.f32 %v1331, %v1331
        %v1364 = vmul.f32 %v1332, %v1332
        %v1365 = vmul.f32 %v1333, %v1333
        %v1366 = vmul.f32 %v1334, %v1334
        %v1367 = vmul.f32 %v1335, %v1335
        %v1368 = vmul.f32 %v1336, %v1336
        %v1369 = vmul.f32 %v1337, %v1337
        %v1370 = vmul.f32 %v1338, %v1338
        %v1371 = vmul.f32 %v1339, %v1339
        %v1372 = vmul.f32 %v1340, %v1340
        %v1373 = vmul.f32 %v1341, %v1341
        %v1374 = vmul.f32 %v1342, %v1342
        %v1375 = vmul.f32 %v1343, %v1343
        %v1376 = vmul.f32 %v1344, %v1344
        %v1377 = vmul.f32 %v1345, %v1345
        %v1378 = vmul.f32 %v1346, %v1346
        %v1379 = vmul.f32 %v1347, %v1347
        %v1380 = vmul.f32 %v1348, %v1348
        %v1381 = vmul.f32 %v1349, %v1349
        %v1382 = vmul.f32 %v1350, %v1350
        %v1383 = vmul.f32 %v1351, %v1351
        %v1384 = vmul.f32 %v1352, %v1352
        %v1385 = vmul.f32 %v1353, %v1353
        %v1386 = vmul.f32 %v1354, %v1354
        %v1387 = vmul.f32 %v1355, %v1355
        %v1388 = vmul.f32 %v1356, %v1356
        %v1389 = vmul.f32 %v1357, %v1357
        %v1390 = vsel %vm820, %v1358, 0.0
        %v1391 = vsel %vm820, %v1359, 0.0
        %v1392 = vadd.f32 %v1390, %v1391
        %v1393 = vsel %vm820, %v1360, 0.0
        %v1394 = vadd.f32 %v1392, %v1393
        %v1395 = vsel %vm820, %v1361, 0.0
        %v1396 = vadd.f32 %v1394, %v1395
        %v1397 = vsel %vm820, %v1362, 0.0
        %v1398 = vadd.f32 %v1396, %v1397
        %v1399 = vsel %vm820, %v1363, 0.0
        %v1400 = vadd.f32 %v1398, %v1399
        %v1401 = vsel %vm820, %v1364, 0.0
        %v1402 = vadd.f32 %v1400, %v1401
        %v1403 = vsel %vm820, %v1365, 0.0
        %v1404 = vadd.f32 %v1402, %v1403
        %v1405 = vsel %vm820, %v1366, 0.0
        %v1406 = vadd.f32 %v1404, %v1405
        %v1407 = vsel %vm820, %v1367, 0.0
        %v1408 = vadd.f32 %v1406, %v1407
        %v1409 = vsel %vm820, %v1368, 0.0
        %v1410 = vadd.f32 %v1408, %v1409
        %v1411 = vsel %vm820, %v1369, 0.0
        %v1412 = vadd.f32 %v1410, %v1411
        %v1413 = vsel %vm820, %v1370, 0.0
        %v1414 = vadd.f32 %v1412, %v1413
        %v1415 = vsel %vm820, %v1371, 0.0
        %v1416 = vadd.f32 %v1414, %v1415
        %v1417 = vsel %vm820, %v1372, 0.0
        %v1418 = vadd.f32 %v1416, %v1417
        %v1419 = vsel %vm820, %v1373, 0.0
        %v1420 = vadd.f32 %v1418, %v1419
        %v1421 = vsel %vm820, %v1374, 0.0
        %v1422 = vadd.f32 %v1420, %v1421
        %v1423 = vsel %vm820, %v1375, 0.0
        %v1424 = vadd.f32 %v1422, %v1423
        %v1425 = vsel %vm820, %v1376, 0.0
        %v1426 = vadd.f32 %v1424, %v1425
        %v1427 = vsel %vm820, %v1377, 0.0
        %v1428 = vadd.f32 %v1426, %v1427
        %v1429 = vsel %vm820, %v1378, 0.0
        %v1430 = vadd.f32 %v1428, %v1429
        %v1431 = vsel %vm820, %v1379, 0.0
        %v1432 = vadd.f32 %v1430, %v1431
        %v1433 = vsel %vm820, %v1380, 0.0
        %v1434 = vadd.f32 %v1432, %v1433
        %v1435 = vsel %vm820, %v1381, 0.0
        %v1436 = vadd.f32 %v1434, %v1435
        %v1437 = vsel %vm820, %v1382, 0.0
        %v1438 = vadd.f32 %v1436, %v1437
        %v1439 = vsel %vm820, %v1383, 0.0
        %v1440 = vadd.f32 %v1438, %v1439
        %v1441 = vsel %vm820, %v1384, 0.0
        %v1442 = vadd.f32 %v1440, %v1441
        %v1443 = vsel %vm820, %v1385, 0.0
        %v1444 = vadd.f32 %v1442, %v1443
        %v1445 = vsel %vm820, %v1386, 0.0
        %v1446 = vadd.f32 %v1444, %v1445
        %v1447 = vsel %vm820, %v1387, 0.0
        %v1448 = vadd.f32 %v1446, %v1447
        %v1449 = vsel %vm820, %v1388, 0.0
        %v1450 = vadd.f32 %v1448, %v1449
        %v1451 = vsel %vm820, %v1389, 0.0
        %v1452 = vadd.f32 %v1450, %v1451
        %v1453 = vrot.slane %v1452, 4
        %v1454 = vadd.f32 %v1452, %v1453
        %v1455 = vrot.slane %v1454, 2
        %v1456 = vadd.f32 %v1454, %v1455
        %v1457 = vrot.slane %v1456, 1
        %v1458 = vadd.f32 %v1456, %v1457
        %v1459 = vmul.f32 %v1458, %v1324
        %v1460 = vadd.f32 %v1459, 1e-05
        %v1461 = vrsqrt.pop %v1460
        %v1462 = vmul.f32 %v1326, %v1461
        %v1463 = vmul.f32 %v1327, %v1461
        %v1464 = vmul.f32 %v1328, %v1461
        %v1465 = vmul.f32 %v1329, %v1461
        %v1466 = vmul.f32 %v1330, %v1461
        %v1467 = vmul.f32 %v1331, %v1461
        %v1468 = vmul.f32 %v1332, %v1461
        %v1469 = vmul.f32 %v1333, %v1461
        %v1470 = vmul.f32 %v1334, %v1461
        %v1471 = vmul.f32 %v1335, %v1461
        %v1472 = vmul.f32 %v1336, %v1461
        %v1473 = vmul.f32 %v1337, %v1461
        %v1474 = vmul.f32 %v1338, %v1461
        %v1475 = vmul.f32 %v1339, %v1461
        %v1476 = vmul.f32 %v1340, %v1461
        %v1477 = vmul.f32 %v1341, %v1461
        %v1478 = vmul.f32 %v1342, %v1461
        %v1479 = vmul.f32 %v1343, %v1461
        %v1480 = vmul.f32 %v1344, %v1461
        %v1481 = vmul.f32 %v1345, %v1461
        %v1482 = vmul.f32 %v1346, %v1461
        %v1483 = vmul.f32 %v1347, %v1461
        %v1484 = vmul.f32 %v1348, %v1461
        %v1485 = vmul.f32 %v1349, %v1461
        %v1486 = vmul.f32 %v1350, %v1461
        %v1487 = vmul.f32 %v1351, %v1461
        %v1488 = vmul.f32 %v1352, %v1461
        %v1489 = vmul.f32 %v1353, %v1461
        %v1490 = vmul.f32 %v1354, %v1461
        %v1491 = vmul.f32 %v1355, %v1461
        %v1492 = vmul.f32 %v1356, %v1461
        %v1493 = vmul.f32 %v1357, %v1461
        %1494 = vst.msk [vmem:[%s363] sm:$0xff] %vm820, %v1462
        %1495 = vst.msk [vmem:[%s363 + $0x8] sm:$0xff] %vm820, %v1463
        %1496 = vst.msk [vmem:[%s363 + $0x10] sm:$0xff] %vm820, %v1464
        %1497 = vst.msk [vmem:[%s363 + $0x18] sm:$0xff] %vm820, %v1465
        %1498 = vst.msk [vmem:[%s363 + $0x20] sm:$0xff] %vm820, %v1466
        %1499 = vst.msk [vmem:[%s363 + $0x28] sm:$0xff] %vm820, %v1467
        %1500 = vst.msk [vmem:[%s363 + $0x30] sm:$0xff] %vm820, %v1468
        %1501 = vst.msk [vmem:[%s363 + $0x38] sm:$0xff] %vm820, %v1469
        %1502 = vst.msk [vmem:[%s363 + $0x40] sm:$0xff] %vm820, %v1470
        %1503 = vst.msk [vmem:[%s363 + $0x48] sm:$0xff] %vm820, %v1471
        %1504 = vst.msk [vmem:[%s363 + $0x50] sm:$0xff] %vm820, %v1472
        %1505 = vst.msk [vmem:[%s363 + $0x58] sm:$0xff] %vm820, %v1473
        %1506 = vst.msk [vmem:[%s363 + $0x60] sm:$0xff] %vm820, %v1474
        %1507 = vst.msk [vmem:[%s363 + $0x68] sm:$0xff] %vm820, %v1475
        %1508 = vst.msk [vmem:[%s363 + $0x70] sm:$0xff] %vm820, %v1476
        %1509 = vst.msk [vmem:[%s363 + $0x78] sm:$0xff] %vm820, %v1477
        %1510 = vst.msk [vmem:[%s363 + $0x80] sm:$0xff] %vm820, %v1478
        %1511 = vst.msk [vmem:[%s363 + $0x88] sm:$0xff] %vm820, %v1479
        %1512 = vst.msk [vmem:[%s363 + $0x90] sm:$0xff] %vm820, %v1480
        %1513 = vst.msk [vmem:[%s363 + $0x98] sm:$0xff] %vm820, %v1481
        %1514 = vst.msk [vmem:[%s363 + $0xa0] sm:$0xff] %vm820, %v1482
        %1515 = vst.msk [vmem:[%s363 + $0xa8] sm:$0xff] %vm820, %v1483
        %1516 = vst.msk [vmem:[%s363 + $0xb0] sm:$0xff] %vm820, %v1484
        %1517 = vst.msk [vmem:[%s363 + $0xb8] sm:$0xff] %vm820, %v1485
        %1518 = vst.msk [vmem:[%s363 + $0xc0] sm:$0xff] %vm820, %v1486
        %1519 = vst.msk [vmem:[%s363 + $0xc8] sm:$0xff] %vm820, %v1487
        %1520 = vst.msk [vmem:[%s363 + $0xd0] sm:$0xff] %vm820, %v1488
        %1521 = vst.msk [vmem:[%s363 + $0xd8] sm:$0xff] %vm820, %v1489
        %1522 = vst.msk [vmem:[%s363 + $0xe0] sm:$0xff] %vm820, %v1490
        %1523 = vst.msk [vmem:[%s363 + $0xe8] sm:$0xff] %vm820, %v1491
        %1524 = vst.msk [vmem:[%s363 + $0xf0] sm:$0xff] %vm820, %v1492
        %1525 = vst.msk [vmem:[%s363 + $0xf8] sm:$0xff] %vm820, %v1493
        %v1526 = vpack.c.bf16 %v1463, %v1462
        %v1527 = vpack.c.bf16 %v1465, %v1464
        %v1528 = vpack.c.bf16 %v1467, %v1466
        %v1529 = vpack.c.bf16 %v1469, %v1468
        %v1530 = vpack.c.bf16 %v1471, %v1470
        %v1531 = vpack.c.bf16 %v1473, %v1472
        %v1532 = vpack.c.bf16 %v1475, %v1474
        %v1533 = vpack.c.bf16 %v1477, %v1476
        %v1534 = vpack.c.bf16 %v1479, %v1478
        %v1535 = vpack.c.bf16 %v1481, %v1480
        %v1536 = vpack.c.bf16 %v1483, %v1482
        %v1537 = vpack.c.bf16 %v1485, %v1484
        %v1538 = vpack.c.bf16 %v1487, %v1486
        %v1539 = vpack.c.bf16 %v1489, %v1488
        %v1540 = vpack.c.bf16 %v1491, %v1490
        %v1541 = vpack.c.bf16 %v1493, %v1492
        %v1542 = vld [vmem:[%s4] sm:$0xf]
        %v1543 = vld [vmem:[%s4 + $0x4] sm:$0xf]
        %v1544 = vld [vmem:[%s4 + $0x8] sm:$0xf]
        %v1545 = vld [vmem:[%s4 + $0xc] sm:$0xf]
        %v1546 = vld [vmem:[%s5] sm:$0x1]
        %v1548 = vlaneseq
        %v1549 = vshrl.u32 %v1548, 7
        %v1550 = vsub.s32 0, %v1549
        %v1551 = vrot.slane %v1546, %v1550
        %v1557 = vunpack.c.l.b16 %v1542
        %v1558 = vunpack.c.l.b16 %v1543
        %v1559 = vunpack.c.l.b16 %v1544
        %v1560 = vunpack.c.l.b16 %v1545
        %v1561 = vpack.c.b16 %v1558, %v1557
        %v1562 = vpack.c.b16 %v1560, %v1559
        %v1566 = vsel %vm820, %v1526, 0
        %v1569 = vsel %vm820, %v1527, 0
        %v1572 = vsel %vm820, %v1528, 0
        %v1575 = vsel %vm820, %v1529, 0
        %v1578 = vsel %vm820, %v1530, 0
        %v1581 = vsel %vm820, %v1531, 0
        %v1584 = vsel %vm820, %v1532, 0
        %v1587 = vsel %vm820, %v1533, 0
        %v1590 = vsel %vm820, %v1534, 0
        %v1593 = vsel %vm820, %v1535, 0
        %v1596 = vsel %vm820, %v1536, 0
        %v1599 = vsel %vm820, %v1537, 0
        %v1602 = vsel %vm820, %v1538, 0
        %v1605 = vsel %vm820, %v1539, 0
        %v1608 = vsel %vm820, %v1540, 0
        %v1611 = vsel %vm820, %v1541, 0
        %1613 = vmatprep.subr.bf16.mxu0 0
        %1614 = vmatpush1.bf16.msra.mxu0 %v1561
        %1615 = vmatprep.subr.bf16.mxu0 0
        %1616 = vmatpush1.bf16.msra.mxu0 %v1562
        %1617 = vmatprep.subr.bf16.mxu0 0
        %1618 = vmatpush1.bf16.msra.mxu0 0
        %1619 = vmatprep.subr.bf16.mxu0 0
        %1620 = vmatpush1.bf16.msra.mxu0 0
        %1621 = vmatprep.subr.bf16.mxu0 0
        %1622 = vmatpush1.bf16.msra.mxu0 0
        %1623 = vmatprep.subr.bf16.mxu0 0
        %1624 = vmatpush1.bf16.msra.mxu0 0
        %1625 = vmatprep.subr.bf16.mxu0 0
        %1626 = vmatpush1.bf16.msra.mxu0 0
        %1627 = vmatprep.subr.bf16.mxu0 0
        %1628 = vmatpush1.bf16.msra.mxu0 0
        %1629 = vmatprep.subr.bf16.mxu0 0
        %1630 = vmatpush1.bf16.msra.mxu0 0
        %1631 = vmatprep.subr.bf16.mxu0 0
        %1632 = vmatpush1.bf16.msra.mxu0 0
        %1633 = vmatprep.subr.bf16.mxu0 0
        %1634 = vmatpush1.bf16.msra.mxu0 0
        %1635 = vmatprep.subr.bf16.mxu0 0
        %1636 = vmatpush1.bf16.msra.mxu0 0
        %1637 = vmatprep.subr.bf16.mxu0 0
        %1638 = vmatpush1.bf16.msra.mxu0 0
        %1639 = vmatprep.subr.bf16.mxu0 0
        %1640 = vmatpush1.bf16.msra.mxu0 0
        %1641 = vmatprep.subr.bf16.mxu0 0
        %1642 = vmatpush1.bf16.msra.mxu0 0
        %1643 = vmatprep.subr.bf16.mxu0 0
        %1644 = vmatpush1.bf16.msra.mxu0 0
        %1645 = vmatprep.mubr.bf16.mxu0 0
        %1646 = vmatmul.mubr.bf16.gmra.mrb[0].mxu0 %v1566
        %v1647 = vpop.f32.mrb[0].mxu0
        %v1648 = vadd.f32 %v1551, %v1647
        %v1649 = vpop.f32.mrb[0].mxu0
        %v1650 = vpop.f32.mrb[0].mxu0
        %v1651 = vadd.f32 %v1551, %v1650
        %v1652 = vpop.f32.mrb[0].mxu0
        %1653 = vmatprep.mubr.bf16.mxu0 0
        %1654 = vmatmul.mubr.bf16.gmra.mrb[0].mxu0 %v1569
        %v1655 = vpop.f32.mrb[0].mxu0
        %v1656 = vadd.f32 %v1551, %v1655
        %v1657 = vpop.f32.mrb[0].mxu0
        %v1658 = vpop.f32.mrb[0].mxu0
        %v1659 = vadd.f32 %v1551, %v1658
        %v1660 = vpop.f32.mrb[0].mxu0
        %1661 = vmatprep.mubr.bf16.mxu0 0
        %1662 = vmatmul.mubr.bf16.gmra.mrb[0].mxu0 %v1572
        %v1663 = vpop.f32.mrb[0].mxu0
        %v1664 = vadd.f32 %v1551, %v1663
        %v1665 = vpop.f32.mrb[0].mxu0
        %v1666 = vpop.f32.mrb[0].mxu0
        %v1667 = vadd.f32 %v1551, %v1666
        %v1668 = vpop.f32.mrb[0].mxu0
        %1669 = vmatprep.mubr.bf16.mxu0 0
        %1670 = vmatmul.mubr.bf16.gmra.mrb[0].mxu0 %v1575
        %v1671 = vpop.f32.mrb[0].mxu0
        %v1672 = vadd.f32 %v1551, %v1671
        %v1673 = vpop.f32.mrb[0].mxu0
        %v1674 = vpop.f32.mrb[0].mxu0
        %v1675 = vadd.f32 %v1551, %v1674
        %v1676 = vpop.f32.mrb[0].mxu0
        %1677 = vmatprep.mubr.bf16.mxu0 0
        %1678 = vmatmul.mubr.bf16.gmra.mrb[0].mxu0 %v1578
        %v1679 = vpop.f32.mrb[0].mxu0
        %v1680 = vadd.f32 %v1551, %v1679
        %v1681 = vpop.f32.mrb[0].mxu0
        %v1682 = vpop.f32.mrb[0].mxu0
        %v1683 = vadd.f32 %v1551, %v1682
        %v1684 = vpop.f32.mrb[0].mxu0
        %1685 = vmatprep.mubr.bf16.mxu0 0
        %1686 = vmatmul.mubr.bf16.gmra.mrb[0].mxu0 %v1581
        %v1687 = vpop.f32.mrb[0].mxu0
        %v1688 = vadd.f32 %v1551, %v1687
        %v1689 = vpop.f32.mrb[0].mxu0
        %v1690 = vpop.f32.mrb[0].mxu0
        %v1691 = vadd.f32 %v1551, %v1690
        %v1692 = vpop.f32.mrb[0].mxu0
        %1693 = vmatprep.mubr.bf16.mxu0 0
        %1694 = vmatmul.mubr.bf16.gmra.mrb[0].mxu0 %v1584
        %v1695 = vpop.f32.mrb[0].mxu0
        %v1696 = vadd.f32 %v1551, %v1695
        %v1697 = vpop.f32.mrb[0].mxu0
        %v1698 = vpop.f32.mrb[0].mxu0
        %v1699 = vadd.f32 %v1551, %v1698
        %v1700 = vpop.f32.mrb[0].mxu0
        %1701 = vmatprep.mubr.bf16.mxu0 0
        %1702 = vmatmul.mubr.bf16.gmra.mrb[0].mxu0 %v1587
        %v1703 = vpop.f32.mrb[0].mxu0
        %v1704 = vadd.f32 %v1551, %v1703
        %v1705 = vpop.f32.mrb[0].mxu0
        %v1706 = vpop.f32.mrb[0].mxu0
        %v1707 = vadd.f32 %v1551, %v1706
        %v1708 = vpop.f32.mrb[0].mxu0
        %1709 = vmatprep.mubr.bf16.mxu0 0
        %1710 = vmatmul.mubr.bf16.gmra.mrb[0].mxu0 %v1590
        %v1711 = vpop.f32.mrb[0].mxu0
        %v1712 = vadd.f32 %v1551, %v1711
        %v1713 = vpop.f32.mrb[0].mxu0
        %v1714 = vpop.f32.mrb[0].mxu0
        %v1715 = vadd.f32 %v1551, %v1714
        %v1716 = vpop.f32.mrb[0].mxu0
        %1717 = vmatprep.mubr.bf16.mxu0 0
        %1718 = vmatmul.mubr.bf16.gmra.mrb[0].mxu0 %v1593
        %v1719 = vpop.f32.mrb[0].mxu0
        %v1720 = vadd.f32 %v1551, %v1719
        %v1721 = vpop.f32.mrb[0].mxu0
        %v1722 = vpop.f32.mrb[0].mxu0
        %v1723 = vadd.f32 %v1551, %v1722
        %v1724 = vpop.f32.mrb[0].mxu0
        %1725 = vmatprep.mubr.bf16.mxu0 0
        %1726 = vmatmul.mubr.bf16.gmra.mrb[0].mxu0 %v1596
        %v1727 = vpop.f32.mrb[0].mxu0
        %v1728 = vadd.f32 %v1551, %v1727
        %v1729 = vpop.f32.mrb[0].mxu0
        %v1730 = vpop.f32.mrb[0].mxu0
        %v1731 = vadd.f32 %v1551, %v1730
        %v1732 = vpop.f32.mrb[0].mxu0
        %1733 = vmatprep.mubr.bf16.mxu0 0
        %1734 = vmatmul.mubr.bf16.gmra.mrb[0].mxu0 %v1599
        %v1735 = vpop.f32.mrb[0].mxu0
        %v1736 = vadd.f32 %v1551, %v1735
        %v1737 = vpop.f32.mrb[0].mxu0
        %v1738 = vpop.f32.mrb[0].mxu0
        %v1739 = vadd.f32 %v1551, %v1738
        %v1740 = vpop.f32.mrb[0].mxu0
        %1741 = vmatprep.mubr.bf16.mxu0 0
        %1742 = vmatmul.mubr.bf16.gmra.mrb[0].mxu0 %v1602
        %v1743 = vpop.f32.mrb[0].mxu0
        %v1744 = vadd.f32 %v1551, %v1743
        %v1745 = vpop.f32.mrb[0].mxu0
        %v1746 = vpop.f32.mrb[0].mxu0
        %v1747 = vadd.f32 %v1551, %v1746
        %v1748 = vpop.f32.mrb[0].mxu0
        %1749 = vmatprep.mubr.bf16.mxu0 0
        %1750 = vmatmul.mubr.bf16.gmra.mrb[0].mxu0 %v1605
        %v1751 = vpop.f32.mrb[0].mxu0
        %v1752 = vadd.f32 %v1551, %v1751
        %v1753 = vpop.f32.mrb[0].mxu0
        %v1754 = vpop.f32.mrb[0].mxu0
        %v1755 = vadd.f32 %v1551, %v1754
        %v1756 = vpop.f32.mrb[0].mxu0
        %1757 = vmatprep.mubr.bf16.mxu0 0
        %1758 = vmatmul.mubr.bf16.gmra.mrb[0].mxu0 %v1608
        %v1759 = vpop.f32.mrb[0].mxu0
        %v1760 = vadd.f32 %v1551, %v1759
        %v1761 = vpop.f32.mrb[0].mxu0
        %v1762 = vpop.f32.mrb[0].mxu0
        %v1763 = vadd.f32 %v1551, %v1762
        %v1764 = vpop.f32.mrb[0].mxu0
        %1765 = vmatprep.mubr.bf16.mxu0 0
        %1766 = vmatmul.mubr.bf16.gmra.mrb[0].mxu0 %v1611
        %v1767 = vpop.f32.mrb[0].mxu0
        %v1768 = vadd.f32 %v1551, %v1767
        %v1769 = vpop.f32.mrb[0].mxu0
        %v1770 = vpop.f32.mrb[0].mxu0
        %v1771 = vadd.f32 %v1551, %v1770
        %v1772 = vpop.f32.mrb[0].mxu0
        %1773 = vdwg.mxu0
        %v1774 = vxor.u32 %v1648, 2147483648
        %v1775 = vxor.u32 %v1651, 2147483648
        %v1776 = vxor.u32 %v1656, 2147483648
        %v1777 = vxor.u32 %v1659, 2147483648
        %v1778 = vxor.u32 %v1664, 2147483648
        %v1779 = vxor.u32 %v1667, 2147483648
        %v1780 = vxor.u32 %v1672, 2147483648
        %v1781 = vxor.u32 %v1675, 2147483648
        %v1782 = vxor.u32 %v1680, 2147483648
        %v1783 = vxor.u32 %v1683, 2147483648
        %v1784 = vxor.u32 %v1688, 2147483648
        %v1785 = vxor.u32 %v1691, 2147483648
        %v1786 = vxor.u32 %v1696, 2147483648
        %v1787 = vxor.u32 %v1699, 2147483648
        %v1788 = vxor.u32 %v1704, 2147483648
        %v1789 = vxor.u32 %v1707, 2147483648
        %v1790 = vxor.u32 %v1712, 2147483648
        %v1791 = vxor.u32 %v1715, 2147483648
        %v1792 = vxor.u32 %v1720, 2147483648
        %v1793 = vxor.u32 %v1723, 2147483648
        %v1794 = vxor.u32 %v1728, 2147483648
        %v1795 = vxor.u32 %v1731, 2147483648
        %v1796 = vxor.u32 %v1736, 2147483648
        %v1797 = vxor.u32 %v1739, 2147483648
        %v1798 = vxor.u32 %v1744, 2147483648
        %v1799 = vxor.u32 %v1747, 2147483648
        %v1800 = vxor.u32 %v1752, 2147483648
        %v1801 = vxor.u32 %v1755, 2147483648
        %v1802 = vxor.u32 %v1760, 2147483648
        %v1803 = vxor.u32 %v1763, 2147483648
        %v1804 = vxor.u32 %v1768, 2147483648
        %v1805 = vxor.u32 %v1771, 2147483648
        %v1806 = vmul.f32 %v1774, 1.442695
        %v1807 = vpow.pop %v1806
        %v1808 = vmul.f32 %v1775, 1.442695
        %v1809 = vpow.pop %v1808
        %v1810 = vmul.f32 %v1776, 1.442695
        %v1811 = vpow.pop %v1810
        %v1812 = vmul.f32 %v1777, 1.442695
        %v1813 = vpow.pop %v1812
        %v1814 = vmul.f32 %v1778, 1.442695
        %v1815 = vpow.pop %v1814
        %v1816 = vmul.f32 %v1779, 1.442695
        %v1817 = vpow.pop %v1816
        %v1818 = vmul.f32 %v1780, 1.442695
        %v1819 = vpow.pop %v1818
        %v1820 = vmul.f32 %v1781, 1.442695
        %v1821 = vpow.pop %v1820
        %v1822 = vmul.f32 %v1782, 1.442695
        %v1823 = vpow.pop %v1822
        %v1824 = vmul.f32 %v1783, 1.442695
        %v1825 = vpow.pop %v1824
        %v1826 = vmul.f32 %v1784, 1.442695
        %v1827 = vpow.pop %v1826
        %v1828 = vmul.f32 %v1785, 1.442695
        %v1829 = vpow.pop %v1828
        %v1830 = vmul.f32 %v1786, 1.442695
        %v1831 = vpow.pop %v1830
        %v1832 = vmul.f32 %v1787, 1.442695
        %v1833 = vpow.pop %v1832
        %v1834 = vmul.f32 %v1788, 1.442695
        %v1835 = vpow.pop %v1834
        %v1836 = vmul.f32 %v1789, 1.442695
        %v1837 = vpow.pop %v1836
        %v1838 = vmul.f32 %v1790, 1.442695
        %v1839 = vpow.pop %v1838
        %v1840 = vmul.f32 %v1791, 1.442695
        %v1841 = vpow.pop %v1840
        %v1842 = vmul.f32 %v1792, 1.442695
        %v1843 = vpow.pop %v1842
        %v1844 = vmul.f32 %v1793, 1.442695
        %v1845 = vpow.pop %v1844
        %v1846 = vmul.f32 %v1794, 1.442695
        %v1847 = vpow.pop %v1846
        %v1848 = vmul.f32 %v1795, 1.442695
        %v1849 = vpow.pop %v1848
        %v1850 = vmul.f32 %v1796, 1.442695
        %v1851 = vpow.pop %v1850
        %v1852 = vmul.f32 %v1797, 1.442695
        %v1853 = vpow.pop %v1852
        %v1854 = vmul.f32 %v1798, 1.442695
        %v1855 = vpow.pop %v1854
        %v1856 = vmul.f32 %v1799, 1.442695
        %v1857 = vpow.pop %v1856
        %v1858 = vmul.f32 %v1800, 1.442695
        %v1859 = vpow.pop %v1858
        %v1860 = vmul.f32 %v1801, 1.442695
        %v1861 = vpow.pop %v1860
        %v1862 = vmul.f32 %v1802, 1.442695
        %v1863 = vpow.pop %v1862
        %v1864 = vmul.f32 %v1803, 1.442695
        %v1865 = vpow.pop %v1864
        %v1866 = vmul.f32 %v1804, 1.442695
        %v1867 = vpow.pop %v1866
        %v1868 = vmul.f32 %v1805, 1.442695
        %v1869 = vpow.pop %v1868
        %v1870 = vadd.f32 %v1807, 1.0
        %v1871 = vadd.f32 %v1809, 1.0
        %v1872 = vadd.f32 %v1811, 1.0
        %v1873 = vadd.f32 %v1813, 1.0
        %v1874 = vadd.f32 %v1815, 1.0
        %v1875 = vadd.f32 %v1817, 1.0
        %v1876 = vadd.f32 %v1819, 1.0
        %v1877 = vadd.f32 %v1821, 1.0
        %v1878 = vadd.f32 %v1823, 1.0
        %v1879 = vadd.f32 %v1825, 1.0
        %v1880 = vadd.f32 %v1827, 1.0
        %v1881 = vadd.f32 %v1829, 1.0
        %v1882 = vadd.f32 %v1831, 1.0
        %v1883 = vadd.f32 %v1833, 1.0
        %v1884 = vadd.f32 %v1835, 1.0
        %v1885 = vadd.f32 %v1837, 1.0
        %v1886 = vadd.f32 %v1839, 1.0
        %v1887 = vadd.f32 %v1841, 1.0
        %v1888 = vadd.f32 %v1843, 1.0
        %v1889 = vadd.f32 %v1845, 1.0
        %v1890 = vadd.f32 %v1847, 1.0
        %v1891 = vadd.f32 %v1849, 1.0
        %v1892 = vadd.f32 %v1851, 1.0
        %v1893 = vadd.f32 %v1853, 1.0
        %v1894 = vadd.f32 %v1855, 1.0
        %v1895 = vadd.f32 %v1857, 1.0
        %v1896 = vadd.f32 %v1859, 1.0
        %v1897 = vadd.f32 %v1861, 1.0
        %v1898 = vadd.f32 %v1863, 1.0
        %v1899 = vadd.f32 %v1865, 1.0
        %v1900 = vadd.f32 %v1867, 1.0
        %v1901 = vadd.f32 %v1869, 1.0
        %v1902 = vrcp.pop %v1870
        %v1903 = vmul.f32 1.0, %v1902
        %v1904 = vrcp.pop %v1871
        %v1905 = vmul.f32 1.0, %v1904
        %v1906 = vrcp.pop %v1872
        %v1907 = vmul.f32 1.0, %v1906
        %v1908 = vrcp.pop %v1873
        %v1909 = vmul.f32 1.0, %v1908
        %v1910 = vrcp.pop %v1874
        %v1911 = vmul.f32 1.0, %v1910
        %v1912 = vrcp.pop %v1875
        %v1913 = vmul.f32 1.0, %v1912
        %v1914 = vrcp.pop %v1876
        %v1915 = vmul.f32 1.0, %v1914
        %v1916 = vrcp.pop %v1877
        %v1917 = vmul.f32 1.0, %v1916
        %v1918 = vrcp.pop %v1878
        %v1919 = vmul.f32 1.0, %v1918
        %v1920 = vrcp.pop %v1879
        %v1921 = vmul.f32 1.0, %v1920
        %v1922 = vrcp.pop %v1880
        %v1923 = vmul.f32 1.0, %v1922
        %v1924 = vrcp.pop %v1881
        %v1925 = vmul.f32 1.0, %v1924
        %v1926 = vrcp.pop %v1882
        %v1927 = vmul.f32 1.0, %v1926
        %v1928 = vrcp.pop %v1883
        %v1929 = vmul.f32 1.0, %v1928
        %v1930 = vrcp.pop %v1884
        %v1931 = vmul.f32 1.0, %v1930
        %v1932 = vrcp.pop %v1885
        %v1933 = vmul.f32 1.0, %v1932
        %v1934 = vrcp.pop %v1886
        %v1935 = vmul.f32 1.0, %v1934
        %v1936 = vrcp.pop %v1887
        %v1937 = vmul.f32 1.0, %v1936
        %v1938 = vrcp.pop %v1888
        %v1939 = vmul.f32 1.0, %v1938
        %v1940 = vrcp.pop %v1889
        %v1941 = vmul.f32 1.0, %v1940
        %v1942 = vrcp.pop %v1890
        %v1943 = vmul.f32 1.0, %v1942
        %v1944 = vrcp.pop %v1891
        %v1945 = vmul.f32 1.0, %v1944
        %v1946 = vrcp.pop %v1892
        %v1947 = vmul.f32 1.0, %v1946
        %v1948 = vrcp.pop %v1893
        %v1949 = vmul.f32 1.0, %v1948
        %v1950 = vrcp.pop %v1894
        %v1951 = vmul.f32 1.0, %v1950
        %v1952 = vrcp.pop %v1895
        %v1953 = vmul.f32 1.0, %v1952
        %v1954 = vrcp.pop %v1896
        %v1955 = vmul.f32 1.0, %v1954
        %v1956 = vrcp.pop %v1897
        %v1957 = vmul.f32 1.0, %v1956
        %v1958 = vrcp.pop %v1898
        %v1959 = vmul.f32 1.0, %v1958
        %v1960 = vrcp.pop %v1899
        %v1961 = vmul.f32 1.0, %v1960
        %v1962 = vrcp.pop %v1900
        %v1963 = vmul.f32 1.0, %v1962
        %v1964 = vrcp.pop %v1901
        %v1965 = vmul.f32 1.0, %v1964
        %v1966 = vld [vmem:[%s6] sm:$0x1]
        %v1968 = vlaneseq
        %v1969 = vshrl.u32 %v1968, 7
        %v1970 = vsub.s32 0, %v1969
        %v1971 = vrot.slane %v1966, %v1970
        %v1973 = vmul.f32 %v1903, %v1971
        %v1974 = vmul.f32 %v1905, %v1971
        %v1975 = vmul.f32 %v1907, %v1971
        %v1976 = vmul.f32 %v1909, %v1971
        %v1977 = vmul.f32 %v1911, %v1971
        %v1978 = vmul.f32 %v1913, %v1971
        %v1979 = vmul.f32 %v1915, %v1971
        %v1980 = vmul.f32 %v1917, %v1971
        %v1981 = vmul.f32 %v1919, %v1971
        %v1982 = vmul.f32 %v1921, %v1971
        %v1983 = vmul.f32 %v1923, %v1971
        %v1984 = vmul.f32 %v1925, %v1971
        %v1985 = vmul.f32 %v1927, %v1971
        %v1986 = vmul.f32 %v1929, %v1971
        %v1987 = vmul.f32 %v1931, %v1971
        %v1988 = vmul.f32 %v1933, %v1971
        %v1989 = vmul.f32 %v1935, %v1971
        %v1990 = vmul.f32 %v1937, %v1971
        %v1991 = vmul.f32 %v1939, %v1971
        %v1992 = vmul.f32 %v1941, %v1971
        %v1993 = vmul.f32 %v1943, %v1971
        %v1994 = vmul.f32 %v1945, %v1971
        %v1995 = vmul.f32 %v1947, %v1971
        %v1996 = vmul.f32 %v1949, %v1971
        %v1997 = vmul.f32 %v1951, %v1971
        %v1998 = vmul.f32 %v1953, %v1971
        %v1999 = vmul.f32 %v1955, %v1971
        %v2000 = vmul.f32 %v1957, %v1971
        %v2001 = vmul.f32 %v1959, %v1971
        %v2002 = vmul.f32 %v1961, %v1971
        %v2003 = vmul.f32 %v1963, %v1971
        %v2004 = vmul.f32 %v1965, %v1971
        %v2005 = vld [vmem:[%s7] sm:$0x1]
        %v2007 = vlaneseq
        %v2008 = vshrl.u32 %v2007, 7
        %v2009 = vsub.s32 0, %v2008
        %v2010 = vrot.slane %v2005, %v2009
        %v2012 = vadd.f32 %v1973, %v2010
        %v2013 = vadd.f32 %v1974, %v2010
        %v2014 = vadd.f32 %v1975, %v2010
        %v2015 = vadd.f32 %v1976, %v2010
        %v2016 = vadd.f32 %v1977, %v2010
        %v2017 = vadd.f32 %v1978, %v2010
        %v2018 = vadd.f32 %v1979, %v2010
        %v2019 = vadd.f32 %v1980, %v2010
        %v2020 = vadd.f32 %v1981, %v2010
        %v2021 = vadd.f32 %v1982, %v2010
        %v2022 = vadd.f32 %v1983, %v2010
        %v2023 = vadd.f32 %v1984, %v2010
        %v2024 = vadd.f32 %v1985, %v2010
        %v2025 = vadd.f32 %v1986, %v2010
        %v2026 = vadd.f32 %v1987, %v2010
        %v2027 = vadd.f32 %v1988, %v2010
        %v2028 = vadd.f32 %v1989, %v2010
        %v2029 = vadd.f32 %v1990, %v2010
        %v2030 = vadd.f32 %v1991, %v2010
        %v2031 = vadd.f32 %v1992, %v2010
        %v2032 = vadd.f32 %v1993, %v2010
        %v2033 = vadd.f32 %v1994, %v2010
        %v2034 = vadd.f32 %v1995, %v2010
        %v2035 = vadd.f32 %v1996, %v2010
        %v2036 = vadd.f32 %v1997, %v2010
        %v2037 = vadd.f32 %v1998, %v2010
        %v2038 = vadd.f32 %v1999, %v2010
        %v2039 = vadd.f32 %v2000, %v2010
        %v2040 = vadd.f32 %v2001, %v2010
        %v2041 = vadd.f32 %v2002, %v2010
        %v2042 = vadd.f32 %v2003, %v2010
        %v2043 = vadd.f32 %v2004, %v2010
        %2044 = vst [vmem:[%s348] sm:$0xff] %v2012
        %2045 = vst [vmem:[%s348 + $0x8] sm:$0xff] %v2013
        %2046 = vst [vmem:[%s348 + $0x10] sm:$0xff] %v2014
        %2047 = vst [vmem:[%s348 + $0x18] sm:$0xff] %v2015
        %2048 = vst [vmem:[%s348 + $0x20] sm:$0xff] %v2016
        %2049 = vst [vmem:[%s348 + $0x28] sm:$0xff] %v2017
        %2050 = vst [vmem:[%s348 + $0x30] sm:$0xff] %v2018
        %2051 = vst [vmem:[%s348 + $0x38] sm:$0xff] %v2019
        %2052 = vst [vmem:[%s348 + $0x40] sm:$0xff] %v2020
        %2053 = vst [vmem:[%s348 + $0x48] sm:$0xff] %v2021
        %2054 = vst [vmem:[%s348 + $0x50] sm:$0xff] %v2022
        %2055 = vst [vmem:[%s348 + $0x58] sm:$0xff] %v2023
        %2056 = vst [vmem:[%s348 + $0x60] sm:$0xff] %v2024
        %2057 = vst [vmem:[%s348 + $0x68] sm:$0xff] %v2025
        %2058 = vst [vmem:[%s348 + $0x70] sm:$0xff] %v2026
        %2059 = vst [vmem:[%s348 + $0x78] sm:$0xff] %v2027
        %2060 = vst [vmem:[%s348 + $0x80] sm:$0xff] %v2028
        %2061 = vst [vmem:[%s348 + $0x88] sm:$0xff] %v2029
        %2062 = vst [vmem:[%s348 + $0x90] sm:$0xff] %v2030
        %2063 = vst [vmem:[%s348 + $0x98] sm:$0xff] %v2031
        %2064 = vst [vmem:[%s348 + $0xa0] sm:$0xff] %v2032
        %2065 = vst [vmem:[%s348 + $0xa8] sm:$0xff] %v2033
        %2066 = vst [vmem:[%s348 + $0xb0] sm:$0xff] %v2034
        %2067 = vst [vmem:[%s348 + $0xb8] sm:$0xff] %v2035
        %2068 = vst [vmem:[%s348 + $0xc0] sm:$0xff] %v2036
        %2069 = vst [vmem:[%s348 + $0xc8] sm:$0xff] %v2037
        %2070 = vst [vmem:[%s348 + $0xd0] sm:$0xff] %v2038
        %2071 = vst [vmem:[%s348 + $0xd8] sm:$0xff] %v2039
        %2072 = vst [vmem:[%s348 + $0xe0] sm:$0xff] %v2040
        %2073 = vst [vmem:[%s348 + $0xe8] sm:$0xff] %v2041
        %2074 = vst [vmem:[%s348 + $0xf0] sm:$0xff] %v2042
        %2075 = vst [vmem:[%s348 + $0xf8] sm:$0xff] %v2043
        %p2076 = scmp.lt.s32.totalorder %s24, 1
        %s2077 = scalar_select %p2076, %s24, 1
        %s2078 = smul.addr %s2077, 32
        %s2079 = smul.addr %s2078, 8
        %s2080 = scalar_lea.vmem %s8, %s2079
        %s2081 = sand.u32 %s236, 1
        %s2082 = scalar_lea.sflag [#allocation3], %s2081
        %s2083 = sand.u32 %s236, 1
        %s2084 = smul.addr %s2083, 256
        %s2085 = scalar_lea.vmem [#allocation2], %s2084
        // Predicated region
        $region53: #{tpu_custom_call.1} parent=51 // pred_check
          %p2086 = pneg %p220
        $region54: #{tpu_custom_call.1} parent=51 // pred_check_branch
          %2088 = sbr.rel (%p2086) target = $region56
        $region55: #{tpu_custom_call.1} parent=51 // pred_region
          _
        $region56: #{tpu_custom_call.1} parent=51 // pred_fallthru
          _
        // Predicated region
        $region57: #{tpu_custom_call.1} parent=51 // pred_check
          %p2089 = pneg %p246
        $region58: #{tpu_custom_call.1} parent=51 // pred_check_branch
          %2091 = sbr.rel (%p2089) target = $region60
        $region59: #{tpu_custom_call.1} parent=51 // pred_region
          %s2093 = ssub.s32 4096, 4096
          %2094 = vsyncadd %s2082, %s2093
          %s2095 = smul.addr %s24, 32
          %s2096 = smul.addr %s2095, 128
          %s2097 = scalar_lea.hbm %s9, %s2096
          %s2098 = sshll.u32 %s2085, 4
          %s2099 = int_to_ptr.vmem [resolvable:$true] %s2098
          %2104 = dma.vmem_to_hbm [thread:$0]  %s2099, 4096, %s2097, %s2082, 128, 128, 8
        $region60: #{tpu_custom_call.1} parent=51 // pred_fallthru
          _
      $region52: #{tpu_custom_call.1} parent=5 // pred_fallthru
        _
      %p2105 = scmp.le.s32.totalorder 2, %s19
      // Predicated region
      $region61: #{tpu_custom_call.1} parent=5 // pred_check
        %p2106 = pneg %p2105
      $region62: #{tpu_custom_call.1} parent=5 // pred_check_branch
        %2108 = sbr.rel (%p2106) target = $region64
      $region63: #{tpu_custom_call.1} parent=5 // pred_region
        %s2109 = ssub.s32 %s19, 2
        // Predicated region
        $region65: #{tpu_custom_call.1} parent=63 // pred_check
          %p2110 = pneg %p226
        $region66: #{tpu_custom_call.1} parent=63 // pred_check_branch
          %2112 = sbr.rel (%p2110) target = $region68
        $region67: #{tpu_custom_call.1} parent=63 // pred_region
          %p2113 = scmp.lt.s32.totalorder %s25, 1
          %s2114 = scalar_select %p2113, %s25, 1
          %s2115 = smul.addr %s2114, 32
          %s2116 = smul.addr %s2115, 8
          %s2117 = scalar_lea.vmem %s8, %s2116
        $region68: #{tpu_custom_call.1} parent=63 // pred_fallthru
          _
        // Predicated region
        $region69: #{tpu_custom_call.1} parent=63 // pred_check
          %p2118 = pneg %p252
        $region70: #{tpu_custom_call.1} parent=63 // pred_check_branch
          %2120 = sbr.rel (%p2118) target = $region72
        $region71: #{tpu_custom_call.1} parent=63 // pred_region
          %s2121 = sand.u32 %s237, 1
          %s2122 = scalar_lea.sflag [#allocation3], %s2121
          %s2123 = sand.u32 %s237, 1
          %s2124 = smul.addr %s2123, 256
          %s2125 = scalar_lea.vmem [#allocation2], %s2124
          %2126 = dma.done %s2122, 4096
        $region72: #{tpu_custom_call.1} parent=63 // pred_fallthru
          _
      $region64: #{tpu_custom_call.1} parent=5 // pred_fallthru
        _
    $region6: #{tpu_custom_call.1} parent=1 // loop_footer
      %s23 = sadd.s32 1, %s19
    $region7: #{tpu_custom_call.1} parent=1 // loop_footer_branch
      %18 = sbr.rel target = $region3
    $region8: #{tpu_custom_call.1} parent=1 // loop_exit
      _
    %2127 = vsyncpa [#allocation3], 1
    %s2128 = scalar_lea.sflag [#allocation3], 1
    %2129 = vsyncpa %s2128, 1

</llo_original>
